<compile_context>
chip_gen: v5e
topology: v5e:2x2
jax: 0.10.0
libtpu: 0.0.40
codegen_flags: <defaults>
</compile_context>

<pallas_src>
import functools

import jax
import jax.numpy as jnp
from jax.experimental import pallas as pl
from jax.experimental.pallas import tpu as pltpu


def _round_up(x, m):
    return (x + m - 1) // m * m


# ---------------------------------------------------------------------------
# Kernel 1: PEFT/LoRA forward pass (the `self.model.forward(...)` delegation).
#   out = mask * ( x @ W_base + bias + (x @ A) @ (scale * B) )
# with [W_base | A] fused into a single MXU operand.
# ---------------------------------------------------------------------------
def _make_lora_kernel(o_pad):
    def kernel(x_ref, wcat_ref, b_ref, bb_ref, m_ref, o_ref):
        x = x_ref[...]                                     # native bf16 MXU operand
        # One MXU pass over the x tile: [base | low] = x @ [W_base | A]
        cat = jnp.dot(x, wcat_ref[...], preferred_element_type=jnp.float32)
        base = cat[:, :o_pad]                              # [t, O_pad]
        low = cat[:, o_pad:].astype(bb_ref.dtype)          # small [t, R_pad] cast
        adapt = jnp.dot(low, bb_ref[...], preferred_element_type=jnp.float32)
        out = base + b_ref[...] + adapt
        o_ref[...] = (m_ref[...] * out).astype(o_ref.dtype)
    return kernel


def _lora_forward_impl(tile_t, x, w_cat, bias, lora_b_scaled, mask):
    """x: [T, H] bf16, w_cat: [H, O_pad + R_pad] bf16 (= [W_base | A]),
    bias: [1, O_pad] f32, lora_b_scaled: [R_pad, O_pad] bf16 (scale folded in),
    mask: [T, 1] f32.  Returns [T, O_pad] in x.dtype."""
    T, H = x.shape
    R = lora_b_scaled.shape[0]
    O = lora_b_scaled.shape[1]
    assert w_cat.shape[1] == O + R

    tile_t = max(16, min(_round_up(tile_t, 16), _round_up(T, 16)))
    grid = (pl.cdiv(T, tile_t),)                 # tail block handled by masked writeback

    # TODO(synk): for real (4k-class) H/O on v7x add an output-feature grid axis
    # (tile_o ~512-1024, both axes "parallel") so per-step VMEM stays bounded.
    out = pl.pallas_call(
        _make_lora_kernel(O),
        out_shape=jax.ShapeDtypeStruct((T, O), x.dtype),   # bf16 store: half the HBM write
        grid=grid,
        in_specs=[
            pl.BlockSpec((tile_t, H), lambda i: (i, 0)),             # x tile (pipelined)
            pl.BlockSpec((H, O + R), lambda i: (0, 0),
                         pipeline_mode=pl.Buffered(1)),              # fused [W|A], VMEM-resident
            pl.BlockSpec((1, O), lambda i: (0, 0),
                         pipeline_mode=pl.Buffered(1)),              # bias
            pl.BlockSpec((R, O), lambda i: (0, 0),
                         pipeline_mode=pl.Buffered(1)),              # scale*B
            pl.BlockSpec((tile_t, 1), lambda i: (i, 0)),             # attention-mask tile
        ],
        out_specs=pl.BlockSpec((tile_t, O), lambda i: (i, 0)),
        compiler_params=pltpu.CompilerParams(
            dimension_semantics=("parallel",),       # shard T-tiles across TCs on v7x
            vmem_limit_bytes=32 * 1024 * 1024),      # safe on v5e/v6e/v7x
    )(x, w_cat, bias, lora_b_scaled, mask)
    return out


@functools.partial(jax.custom_vjp, nondiff_argnums=(0,))
def lora_forward(tile_t, x, w_cat, bias, lora_b_scaled, mask):
    return _lora_forward_impl(tile_t, x, w_cat, bias, lora_b_scaled, mask)


def _lora_forward_fwd(tile_t, x, w_cat, bias, lora_b_scaled, mask):
    out = _lora_forward_impl(tile_t, x, w_cat, bias, lora_b_scaled, mask)
    return out, (x, w_cat, lora_b_scaled, mask)


def _lora_forward_bwd(tile_t, res, g):
    # Plain-JAX backward (standard matmul VJPs); pallas_call has no automatic AD.
    x, w_cat, lora_b_scaled, mask = res
    R = lora_b_scaled.shape[0]
    O = lora_b_scaled.shape[1]
    xf = x.astype(jnp.float32)
    wcf = w_cat.astype(jnp.float32)
    bsf = lora_b_scaled.astype(jnp.float32)
    dz = g.astype(jnp.float32) * mask                       # [T, O]
    low = xf @ wcf[:, O:]                                   # [T, R]
    d_low = dz @ bsf.T                                      # [T, R]
    d_bs = low.T @ dz                                       # [R, O]
    d_cat = jnp.concatenate([dz, d_low], axis=1)            # [T, O+R]
    d_wcat = xf.T @ d_cat                                   # [H, O+R]
    d_x = d_cat @ wcf.T                                     # [T, H]
    d_bias = jnp.sum(dz, axis=0, keepdims=True)             # [1, O]
    d_mask = jnp.zeros_like(mask)                           # attention mask is not trained
    return (d_x.astype(x.dtype), d_wcat.astype(w_cat.dtype),
            d_bias.astype(jnp.float32), d_bs.astype(lora_b_scaled.dtype), d_mask)


lora_forward.defvjp(_lora_forward_fwd, _lora_forward_bwd)


# ---------------------------------------------------------------------------
# Kernel 2: sum of L1 norms of the penalized weights (compute_sum_l1_norms).
# Large lane-dense parameters are streamed in ~2 MiB row tiles directly from
# HBM, reduced per tile into a tiny (1, C) f32 accumulator (no full-tile acc
# load/store per step); the row-validity mask only runs on the final partial
# tile.  Tiny / narrow / 1-D parameters are computed in plain JAX: at those
# sizes the whole L1 path is launch-bound, not bandwidth-bound.
# ---------------------------------------------------------------------------
_L1_MIN_KERNEL_BYTES = 64 * 1024


def _make_l1_kernel(tail_rows):
    def kernel(w_ref, o_ref, acc_ref):
        i = pl.program_id(0)
        last = pl.num_programs(0) - 1

        @pl.when(i == 0)
        def _():
            acc_ref[...] = jnp.zeros_like(acc_ref)

        vals = jnp.abs(w_ref[...].astype(jnp.float32))
        if tail_rows:
            @pl.when(i != last)
            def _():
                acc_ref[...] += jnp.sum(vals, axis=0, keepdims=True)

            @pl.when(i == last)
            def _():
                rows = jax.lax.broadcasted_iota(jnp.int32, vals.shape, 0)
                acc_ref[...] += jnp.sum(jnp.where(rows < tail_rows, vals, 0.0),
                                        axis=0, keepdims=True)
        else:
            acc_ref[...] += jnp.sum(vals, axis=0, keepdims=True)

        @pl.when(i == last)
        def _():
            o_ref[...] = jnp.sum(acc_ref[...]).reshape(1, 1)
    return kernel


def _l1_sum_impl(p, *, target_tile_bytes=2 << 20, max_tile_rows=4096):
    """L1 norm of a single parameter, streamed directly from HBM when large."""
    p2d = p.reshape(1, -1) if p.ndim < 2 else p.reshape(-1, p.shape[-1])
    R, C = p2d.shape
    nbytes = p2d.size * p2d.dtype.itemsize
    row_bytes = max(1, C * p2d.dtype.itemsize)

    # Launch-bound / lane-masked / awkward cases: plain JAX is faster & safer.
    if nbytes < _L1_MIN_KERNEL_BYTES or C % 128 != 0 or row_bytes > target_tile_bytes:
        return jnp.sum(jnp.abs(p2d.astype(jnp.float32)))

    tile_rows = min(max_tile_rows, max(32, (target_tile_bytes // row_bytes) // 32 * 32))
    if R <= tile_rows:
        tile_rows = R                          # single full block
    n_tiles = pl.cdiv(R, tile_rows)
    tail_rows = R % tile_rows if n_tiles > 1 else 0

    # TODO(synk): on v7x a leading size-2 "parallel" grid axis (two row halves,
    # two partial sums) would use both TensorCores' HBM paths.
    out = pl.pallas_call(
        _make_l1_kernel(tail_rows),
        out_shape=jax.ShapeDtypeStruct((1, 1), jnp.float32),
        grid=(n_tiles,),
        in_specs=[pl.BlockSpec((tile_rows, C), lambda i: (i, 0))],
        out_specs=pl.BlockSpec((1, 1), lambda i: (0, 0)),
        scratch_shapes=[pltpu.VMEM((1, C), jnp.float32)],
        compiler_params=pltpu.CompilerParams(
            dimension_semantics=("arbitrary",),
            vmem_limit_bytes=32 * 1024 * 1024),
    )(p2d)
    return out[0, 0]


@jax.custom_vjp
def l1_norm(p):
    return _l1_sum_impl(p)


def _l1_fwd(p):
    return _l1_sum_impl(p), p


def _l1_bwd(p, g):
    # d|w|/dw = sign(w); backward in plain JAX (elementwise, no kernel needed).
    return ((g * jnp.sign(p.astype(jnp.float32))).astype(p.dtype),)


l1_norm.defvjp(_l1_fwd, _l1_bwd)


def sum_l1_norms(param_list):
    total = jnp.float32(0.0)
    for p in param_list:
        total = total + l1_norm(p)
    return total


# ---------------------------------------------------------------------------
# ABACORegularizationModel (synthetic PEFT inner model, deterministic init).
# adjust_optimizers_settings / get_logging_info / PeftModel introspection are
# host-side bookkeeping, not kernels.
# TODO(synk): optimizer-settings plumbing and logging have no Pallas equivalent.
# ---------------------------------------------------------------------------
class ABACORegularizationModelPallas:
    def __init__(self, key, vocab=64, hidden=32, out=32, rank=4, alpha=8.0,
                 initial_regularization_weight=0.1,
                 max_regularization_weight=1.0,
                 start_step_regularization=0,
                 steps_regularization_weight_resets=10,
                 tile_t=256,
                 param_dtype=jnp.bfloat16):
        k1, k2, k3, k4, k5 = jax.random.split(key, 5)
        emb = (jax.random.normal(k1, (vocab, hidden), jnp.float32) * 0.02).astype(param_dtype)
        w_base = (jax.random.normal(k2, (hidden, out), jnp.float32) * 0.02).astype(param_dtype)
        bias = jax.random.normal(k3, (1, out), jnp.float32) * 0.02
        lora_a = (jax.random.normal(k4, (hidden, rank), jnp.float32) * 0.1).astype(param_dtype)
        lora_b = jax.random.normal(k5, (rank, out), jnp.float32) * 0.1
        scale = alpha / rank

        self.out_features = out
        self.tile_t = tile_t

        # Init-time (one-off) MXU-friendly zero-padding (numerically exact):
        # O padded to a multiple of 256 (full 256-wide MXU fill on v6e/v7x),
        # LoRA rank padded to a full 128-lane tile.
        o_pad = _round_up(out, 256)
        r_pad = _round_up(rank, 128)
        self.o_pad = o_pad
        self.embedding = emb
        self.w_base_pad = jnp.pad(w_base, ((0, 0), (0, o_pad - out)))
        self.bias_pad = jnp.pad(bias, ((0, 0), (0, o_pad - out)))       # f32
        self.lora_a_pad = jnp.pad(lora_a, ((0, 0), (0, r_pad - rank)))
        # Fold the (alpha/r) scale into B and fuse [W_base | A] once at init.
        self.lora_b_scaled = (scale * jnp.pad(lora_b, ((0, r_pad - rank),
                                                       (0, o_pad - out)))).astype(param_dtype)
        self.w_cat = jnp.concatenate([self.w_base_pad, self.lora_a_pad], axis=1)

        # Penalize the zero-padded tensors the kernel actually consumes
        # (zero padding contributes exactly 0 to the L1 -> single source of
        # truth).  In a real training loop w_cat would be rebuilt from (or be)
        # the trainables each step.
        self.layers_to_penalize = [self.embedding, self.w_base_pad, self.bias_pad]
        self.layers_to_exclude = [self.lora_a_pad, self.lora_b_scaled]

        self.initial_regularization_weight = float(initial_regularization_weight)
        self.max_regularization_weight = float(max_regularization_weight)
        self.start_step_regularization = start_step_regularization
        self.steps_regularization_weight_resets = steps_regularization_weight_resets

    def adjust_optimizers_settings(self, optimizer_settings):
        return optimizer_settings        # host-side bookkeeping only

    def forward(self, input_ids, attention_mask):
        """input_ids: [B, S] int32, attention_mask: [B, S] -> [B, S, out]."""
        B, S = input_ids.shape
        # TODO(synk): fuse the embedding gather into the forward kernel via
        # scalar-prefetched input_ids to avoid the x HBM round-trip.
        x = jnp.take(self.embedding, input_ids.reshape(-1), axis=0)     # [T, H]
        mask = attention_mask.reshape(-1, 1).astype(jnp.float32)        # [T, 1]
        out = lora_forward(self.tile_t, x, self.w_cat, self.bias_pad,
                           self.lora_b_scaled, mask)                    # [T, O_pad] bf16
        return out[:, :self.out_features].reshape(B, S, self.out_features)

    def get_unweighted_penalization(self):
        return sum_l1_norms(self.layers_to_penalize)

    def get_training_penalization_loss(self, task_loss, training_step):
        # Mirrors RegularizedTrainingInterface: fixed weight is detached
        # (torch: (loss / penalization).clone().detach()).
        if training_step < self.start_step_regularization:
            return jnp.float32(0.0)
        unweighted = self.get_unweighted_penalization()
        fixed_w = jax.lax.stop_gradient(task_loss / unweighted)
        weighted = unweighted * fixed_w
        adaptive_w = (self.initial_regularization_weight
                      + (self.max_regularization_weight
                         - self.initial_regularization_weight)
                      * ((training_step % self.steps_regularization_weight_resets) + 1)
                      / self.steps_regularization_weight_resets)
        return weighted * adaptive_w


if __name__ == "__main__":
    key = jax.random.PRNGKey(0)
    kmodel, kids, kmask, kbig = jax.random.split(key, 4)

    B, S, VOCAB, H, OUT, RANK = 4, 200, 2048, 128, 32, 4
    model = ABACORegularizationModelPallas(kmodel, vocab=VOCAB, hidden=H,
                                           out=OUT, rank=RANK, tile_t=256)

    input_ids = jax.random.randint(kids, (B, S), 0, VOCAB, dtype=jnp.int32)
    attention_mask = (jax.random.uniform(kmask, (B, S)) > 0.2).astype(jnp.int32)

    # Forward pass (wrapped PEFT model) through the fused/tiled Pallas kernel.
    # T = 800 is NOT a multiple of tile_t=256 -> exercises the padding-free
    # tail-block path (masked output writeback).
    out = model.forward(input_ids, attention_mask)
    out = jax.block_until_ready(out)

    # Regularization-loss path (embedding L1 goes through the Pallas kernel,
    # tiny params through the plain-JAX fallback).
    reg_loss = model.get_training_penalization_loss(
        task_loss=jnp.float32(1.0), training_step=3)
    reg_loss = jax.block_until_ready(reg_loss)

    # ---- Reference checks (plain JAX with matching bf16-in / f32-accum math) ----
    x_ref = jnp.take(model.embedding, input_ids.reshape(-1), axis=0)
    m_ref = attention_mask.reshape(-1, 1).astype(jnp.float32)
    cat = jnp.dot(x_ref, model.w_cat, preferred_element_type=jnp.float32)
    base = cat[:, :model.o_pad]
    low = cat[:, model.o_pad:].astype(model.lora_b_scaled.dtype)
    adapt = jnp.dot(low, model.lora_b_scaled, preferred_element_type=jnp.float32)
    ref_full = (m_ref * (base + model.bias_pad + adapt)).astype(out.dtype)
    ref_out = ref_full[:, :OUT].reshape(B, S, OUT)
    assert jnp.allclose(out.astype(jnp.float32), ref_out.astype(jnp.float32),
                        atol=5e-3, rtol=5e-2), "forward mismatch"

    ref_l1 = sum(jnp.sum(jnp.abs(p.astype(jnp.float32)))
                 for p in model.layers_to_penalize)
    got_l1 = model.get_unweighted_penalization()
    assert jnp.allclose(got_l1, ref_l1, rtol=1e-4, atol=1e-2), "l1 mismatch"

    # Explicitly exercise the multi-tile reduction with a masked tail tile.
    big = jax.random.normal(kbig, (1000, 256), jnp.float32)
    got_big = _l1_sum_impl(big, target_tile_bytes=256 * 256 * 4)   # 4 tiles, partial last
    got_big = jax.block_until_ready(got_big)
    assert jnp.allclose(got_big, jnp.sum(jnp.abs(big)),
                        rtol=5e-4, atol=1e-1), "tiled l1 mismatch"

    # The L1 path is differentiable (custom_vjp): d|w|/dw = sign(w).
    g_big = jax.grad(l1_norm)(big)
    assert jnp.allclose(g_big, jnp.sign(big)), "l1 grad mismatch"

    assert bool(jnp.isfinite(reg_loss))
    print("KERNEL_OK")
</pallas_src>

<mosaic_0001>
module attributes {stable_mosaic.version = 11 : i64} {
  func.func @kernel(%arg0: i32, %arg1: memref<256x128xbf16, #tpu.memory_space<vmem>>, %arg2: memref<128x384xbf16, #tpu.memory_space<vmem>>, %arg3: memref<1x256xf32, #tpu.memory_space<vmem>>, %arg4: memref<128x256xbf16, #tpu.memory_space<vmem>>, %arg5: memref<256x1xf32, #tpu.memory_space<vmem>>, %arg6: memref<256x256xbf16, #tpu.memory_space<vmem>>) attributes {dimension_semantics = [#tpu.dimension_semantics<parallel>], iteration_bounds = array<i64: 4>, scalar_prefetch = 0 : i64, scratch_operands = 0 : i64, tpu.core_type = #tpu.core_type<tc>, window_params = [{transform_indices = @transform_0, window_bounds = array<i64: 256, 128>}, {pipeline_mode = #tpu.pipeline_mode<synchronous>, transform_indices = @transform_1, window_bounds = array<i64: 128, 384>}, {pipeline_mode = #tpu.pipeline_mode<synchronous>, transform_indices = @transform_2, window_bounds = array<i64: 1, 256>}, {pipeline_mode = #tpu.pipeline_mode<synchronous>, transform_indices = @transform_3, window_bounds = array<i64: 128, 256>}, {transform_indices = @transform_4, window_bounds = array<i64: 256, 1>}, {transform_indices = @transform_5, window_bounds = array<i64: 256, 256>}]} {
    %c0 = arith.constant 0 : index
    %c0_0 = arith.constant 0 : index
    %0 = vector.load %arg1[%c0, %c0_0] : memref<256x128xbf16, #tpu.memory_space<vmem>>, vector<256x128xbf16>
    %c0_1 = arith.constant 0 : index
    %c0_2 = arith.constant 0 : index
    %1 = vector.load %arg2[%c0_1, %c0_2] : memref<128x384xbf16, #tpu.memory_space<vmem>>, vector<128x384xbf16>
    %cst = arith.constant dense<0.000000e+00> : vector<256x384xf32>
    %2 = tpu.matmul %0, %1, %cst {dimension_numbers = #tpu.dot_dimension_numbers<[1], [0], [0], [1], [0, 0, 1, 1], [], []>} : vector<256x128xbf16>, vector<128x384xbf16>, vector<256x384xf32> -> vector<256x384xf32>
    %3 = vector.extract_strided_slice %2 {offsets = [0, 0], sizes = [256, 256], strides = [1, 1]} : vector<256x384xf32> to vector<256x256xf32>
    %4 = vector.extract_strided_slice %2 {offsets = [0, 256], sizes = [256, 128], strides = [1, 1]} : vector<256x384xf32> to vector<256x128xf32>
    %5 = arith.truncf %4 : vector<256x128xf32> to vector<256x128xbf16>
    %c0_3 = arith.constant 0 : index
    %c0_4 = arith.constant 0 : index
    %6 = vector.load %arg4[%c0_3, %c0_4] : memref<128x256xbf16, #tpu.memory_space<vmem>>, vector<128x256xbf16>
    %cst_5 = arith.constant dense<0.000000e+00> : vector<256x256xf32>
    %7 = tpu.matmul %5, %6, %cst_5 {dimension_numbers = #tpu.dot_dimension_numbers<[1], [0], [0], [1], [0, 0, 1, 1], [], []>} : vector<256x128xbf16>, vector<128x256xbf16>, vector<256x256xf32> -> vector<256x256xf32>
    %c0_6 = arith.constant 0 : index
    %c0_7 = arith.constant 0 : index
    %8 = vector.load %arg3[%c0_6, %c0_7] : memref<1x256xf32, #tpu.memory_space<vmem>>, vector<1x256xf32>
    %9 = vector.broadcast %8 : vector<1x256xf32> to vector<256x256xf32>
    %10 = arith.addf %3, %9 : vector<256x256xf32>
    %11 = arith.addf %10, %7 : vector<256x256xf32>
    %c0_8 = arith.constant 0 : index
    %c0_9 = arith.constant 0 : index
    %12 = vector.load %arg5[%c0_8, %c0_9] : memref<256x1xf32, #tpu.memory_space<vmem>>, vector<256x1xf32>
    %13 = vector.broadcast %12 : vector<256x1xf32> to vector<256x256xf32>
    %14 = arith.mulf %13, %11 : vector<256x256xf32>
    %15 = arith.truncf %14 : vector<256x256xf32> to vector<256x256xbf16>
    %c0_10 = arith.constant 0 : index
    %c0_11 = arith.constant 0 : index
    %16 = vector.load %arg6[%c0_10, %c0_11] : memref<256x256xbf16, #tpu.memory_space<vmem>>, vector<256x256xbf16>
    tpu.vector_store %arg6[%c0_10, %c0_11], %15 {strides = array<i32>} : memref<256x256xbf16, #tpu.memory_space<vmem>>, vector<256x256xbf16>,
    return
  }
  func.func @transform_0(%arg0: i32) -> (i32, i32) {
    %c0_i32 = arith.constant 0 : i32
    %c0_i32_0 = arith.constant 0 : i32
    return %arg0, %c0_i32 : i32, i32
  }
  func.func @transform_1(%arg0: i32) -> (i32, i32) {
    %c0_i32 = arith.constant 0 : i32
    %c0_i32_0 = arith.constant 0 : i32
    %c0_i32_1 = arith.constant 0 : i32
    return %c0_i32, %c0_i32_0 : i32, i32
  }
  func.func @transform_2(%arg0: i32) -> (i32, i32) {
    %c0_i32 = arith.constant 0 : i32
    %c0_i32_0 = arith.constant 0 : i32
    %c0_i32_1 = arith.constant 0 : i32
    return %c0_i32, %c0_i32_0 : i32, i32
  }
  func.func @transform_3(%arg0: i32) -> (i32, i32) {
    %c0_i32 = arith.constant 0 : i32
    %c0_i32_0 = arith.constant 0 : i32
    %c0_i32_1 = arith.constant 0 : i32
    return %c0_i32, %c0_i32_0 : i32, i32
  }
  func.func @transform_4(%arg0: i32) -> (i32, i32) {
    %c0_i32 = arith.constant 0 : i32
    %c0_i32_0 = arith.constant 0 : i32
    return %arg0, %c0_i32 : i32, i32
  }
  func.func @transform_5(%arg0: i32) -> (i32, i32) {
    %c0_i32 = arith.constant 0 : i32
    %c0_i32_0 = arith.constant 0 : i32
    return %arg0, %c0_i32 : i32, i32
  }
}

</mosaic_0001>

<llo_original>
// kernel: tpu_custom_call.1
$region0: #{tpu_custom_call.1}
  #allocation0 [shape = 'u32[]', space=smem, size = 0x4, offset = 0x4, fixed_abs, tag = 'smem constant byte address 0x4 - core index']
  #allocation1 [shape = 'u32[72,128]{1,0:T(1,128)}', space=vmem, size = 0x9000, scoped, tag = 'internal scratch']
  %s0 = inlined_call_operand.vmem [shape: bf16[800,128], index: 0, kind: input, shape index: {}]
  %s1 = inlined_call_operand.vmem [shape: bf16[128,384], index: 1, kind: input, shape index: {}]
  %s2 = inlined_call_operand.vmem [shape: f32[1,256], index: 2, kind: input, shape index: {}]
  %s3 = inlined_call_operand.vmem [shape: bf16[128,256], index: 3, kind: input, shape index: {}]
  %s4 = inlined_call_operand.vmem [shape: f32[800,1], index: 4, kind: input, shape index: {}]
  %s5 = inlined_call_operand.hbm [shape: bf16[800,256], index: 5, kind: output, shape index: {}]
  %s6 = sld [smem:[#allocation0]]
  $region53: #{tpu_custom_call.1} parent=0
    _
  %s8 = ssub.s32 1, %s6
  %s9 = scalar_select 0, %s8, %s6
  $region1: #{tpu_custom_call.1} parent=0
    #allocation2 [shape = 'u8[262144]{0}', space=vmem, size = 0x40000, scoped, tag = 'output window, operand 0']
    #allocation3 [shape = 's32[2]{0}', space=sflag, size = 0x8, scoped, tag = 'scoped memory for tpu_custom_call.1']
    %10 = vsyncpa [#allocation3], 0
    %s11 = scalar_lea.sflag [#allocation3], 1
    %12 = vsyncpa %s11, 0
    loop: start=0, step=1, limit=6
    $region2: #{tpu_custom_call.1} parent=1 // loop_pre_header
      _
    $region3: #{tpu_custom_call.1} parent=1 // loop_header
      %s14 = sphi 0, %s18
      %p15 = scmp.ge.s32.totalorder %s14, 6
      %s24 = sphi 0, %s26
      %s27 = sphi 0, %s24
      %s28 = sphi 0, %s27
      %s44 = sphi 0, %s28
      %s48 = sphi 0, %s48
      %s50 = sphi 0, %s48
      %s51 = sphi 0, %s50
      %s65 = sphi 0, %s51
      %s69 = sphi 0, %s69
      %s71 = sphi 0, %s69
      %s72 = sphi 0, %s71
      %s86 = sphi 0, %s72
      %s90 = sphi 0, %s90
      %s92 = sphi 0, %s90
      %s93 = sphi 0, %s92
      %s107 = sphi 0, %s93
      %s113 = sphi 0, %s115
      %s116 = sphi 0, %s113
      %s117 = sphi 0, %s116
      %s133 = sphi 0, %s117
      %s139 = sphi 0, %s141
      %s142 = sphi 0, %s139
      %s143 = sphi 0, %s142
      %s159 = sphi 0, %s143
    $region4: #{tpu_custom_call.1} parent=1 // loop_header_branch
      %17 = sbr.rel (%p15) target = $region8
    $region5: #{tpu_custom_call.1} parent=1 // loop_body
      %s19 = ssub.s32 %s14, 1
      %s20 = ssub.s32 %s14, 2
      %s21 = sadd.s32 %s14, 1
      %s22 = ssub.s32 %s14, %s21
      %p23 = scmp.eq.s32.totalorder %s22, 0
      %s25 = sadd.s32 %s24, 1
      %s26 = scalar_select %p23, %s24, %s25
      %p29 = pneg %p23
      %p30 = scmp.eq.s32.totalorder %s14, 3
      %p31 = por %p29, %p30
      %p32 = scmp.ne.s32.totalorder %s24, %s27
      %p33 = scmp.eq.s32.totalorder %s14, 0
      %p34 = por %p32, %p33
      %p35 = scmp.ne.s32.totalorder %s24, %s27
      %p36 = scmp.eq.s32.totalorder %s19, 3
      %p37 = por %p35, %p36
      %p38 = scmp.ne.s32.totalorder %s27, %s28
      %p39 = scmp.eq.s32.totalorder %s19, 0
      %p40 = por %p38, %p39
      %p41 = scmp.ne.s32.totalorder %s27, %s28
      %p42 = scmp.eq.s32.totalorder %s20, 3
      %p43 = por %p41, %p42
      %p45 = scmp.ne.s32.totalorder %s28, %s44
      %p46 = scmp.eq.s32.totalorder %s20, 0
      %p47 = por %p45, %p46
      %s49 = sadd.s32 %s48, 1
      %p52 = scmp.eq.s32.totalorder %s14, 3
      %p53 = scmp.ne.s32.totalorder %s48, %s50
      %p54 = scmp.eq.s32.totalorder %s14, 0
      %p55 = por %p53, %p54
      %p56 = scmp.ne.s32.totalorder %s48, %s50
      %p57 = scmp.eq.s32.totalorder %s19, 3
      %p58 = por %p56, %p57
      %p59 = scmp.ne.s32.totalorder %s50, %s51
      %p60 = scmp.eq.s32.totalorder %s19, 0
      %p61 = por %p59, %p60
      %p62 = scmp.ne.s32.totalorder %s50, %s51
      %p63 = scmp.eq.s32.totalorder %s20, 3
      %p64 = por %p62, %p63
      %p66 = scmp.ne.s32.totalorder %s51, %s65
      %p67 = scmp.eq.s32.totalorder %s20, 0
      %p68 = por %p66, %p67
      %s70 = sadd.s32 %s69, 1
      %p73 = scmp.eq.s32.totalorder %s14, 3
      %p74 = scmp.ne.s32.totalorder %s69, %s71
      %p75 = scmp.eq.s32.totalorder %s14, 0
      %p76 = por %p74, %p75
      %p77 = scmp.ne.s32.totalorder %s69, %s71
      %p78 = scmp.eq.s32.totalorder %s19, 3
      %p79 = por %p77, %p78
      %p80 = scmp.ne.s32.totalorder %s71, %s72
      %p81 = scmp.eq.s32.totalorder %s19, 0
      %p82 = por %p80, %p81
      %p83 = scmp.ne.s32.totalorder %s71, %s72
      %p84 = scmp.eq.s32.totalorder %s20, 3
      %p85 = por %p83, %p84
      %p87 = scmp.ne.s32.totalorder %s72, %s86
      %p88 = scmp.eq.s32.totalorder %s20, 0
      %p89 = por %p87, %p88
      %s91 = sadd.s32 %s90, 1
      %p94 = scmp.eq.s32.totalorder %s14, 3
      %p95 = scmp.ne.s32.totalorder %s90, %s92
      %p96 = scmp.eq.s32.totalorder %s14, 0
      %p97 = por %p95, %p96
      %p98 = scmp.ne.s32.totalorder %s90, %s92
      %p99 = scmp.eq.s32.totalorder %s19, 3
      %p100 = por %p98, %p99
      %p101 = scmp.ne.s32.totalorder %s92, %s93
      %p102 = scmp.eq.s32.totalorder %s19, 0
      %p103 = por %p101, %p102
      %p104 = scmp.ne.s32.totalorder %s92, %s93
      %p105 = scmp.eq.s32.totalorder %s20, 3
      %p106 = por %p104, %p105
      %p108 = scmp.ne.s32.totalorder %s93, %s107
      %p109 = scmp.eq.s32.totalorder %s20, 0
      %p110 = por %p108, %p109
      %s111 = ssub.s32 %s14, %s21
      %p112 = scmp.eq.s32.totalorder %s111, 0
      %s114 = sadd.s32 %s113, 1
      %s115 = scalar_select %p112, %s113, %s114
      %p118 = pneg %p112
      %p119 = scmp.eq.s32.totalorder %s14, 3
      %p120 = por %p118, %p119
      %p121 = scmp.ne.s32.totalorder %s113, %s116
      %p122 = scmp.eq.s32.totalorder %s14, 0
      %p123 = por %p121, %p122
      %p124 = scmp.ne.s32.totalorder %s113, %s116
      %p125 = scmp.eq.s32.totalorder %s19, 3
      %p126 = por %p124, %p125
      %p127 = scmp.ne.s32.totalorder %s116, %s117
      %p128 = scmp.eq.s32.totalorder %s19, 0
      %p129 = por %p127, %p128
      %p130 = scmp.ne.s32.totalorder %s116, %s117
      %p131 = scmp.eq.s32.totalorder %s20, 3
      %p132 = por %p130, %p131
      %p134 = scmp.ne.s32.totalorder %s117, %s133
      %p135 = scmp.eq.s32.totalorder %s20, 0
      %p136 = por %p134, %p135
      %s137 = ssub.s32 %s14, %s21
      %p138 = scmp.eq.s32.totalorder %s137, 0
      %s140 = sadd.s32 %s139, 1
      %s141 = scalar_select %p138, %s139, %s140
      %p144 = pneg %p138
      %p145 = scmp.eq.s32.totalorder %s14, 3
      %p146 = por %p144, %p145
      %p147 = scmp.ne.s32.totalorder %s139, %s142
      %p148 = scmp.eq.s32.totalorder %s14, 0
      %p149 = por %p147, %p148
      %p150 = scmp.ne.s32.totalorder %s139, %s142
      %p151 = scmp.eq.s32.totalorder %s19, 3
      %p152 = por %p150, %p151
      %p153 = scmp.ne.s32.totalorder %s142, %s143
      %p154 = scmp.eq.s32.totalorder %s19, 0
      %p155 = por %p153, %p154
      %p156 = scmp.ne.s32.totalorder %s142, %s143
      %p157 = scmp.eq.s32.totalorder %s20, 3
      %p158 = por %p156, %p157
      %p160 = scmp.ne.s32.totalorder %s143, %s159
      %p161 = scmp.eq.s32.totalorder %s20, 0
      %p162 = por %p160, %p161
      %p163 = scmp.le.s32.totalorder 1, %s14
      %p164 = scmp.lt.s32.totalorder %s14, 5
      %p165 = pnand %p163, %p164
      %p166 = pneg %p165
      // Predicated region
      $region9: #{tpu_custom_call.1} parent=5 // pred_check
        _
      $region10: #{tpu_custom_call.1} parent=5 // pred_check_branch
        %168 = sbr.rel (%p165) target = $region12
      $region11: #{tpu_custom_call.1} parent=5 // pred_region
        %s169 = ssub.s32 %s14, 1
        // Predicated region
        $region13: #{tpu_custom_call.1} parent=11 // pred_check
          %p170 = pneg %p61
        $region14: #{tpu_custom_call.1} parent=11 // pred_check_branch
          %172 = sbr.rel (%p170) target = $region16
        $region15: #{tpu_custom_call.1} parent=11 // pred_region
          _
        $region16: #{tpu_custom_call.1} parent=11 // pred_fallthru
          _
        // Predicated region
        $region17: #{tpu_custom_call.1} parent=11 // pred_check
          %p173 = pneg %p82
        $region18: #{tpu_custom_call.1} parent=11 // pred_check_branch
          %175 = sbr.rel (%p173) target = $region20
        $region19: #{tpu_custom_call.1} parent=11 // pred_region
          _
        $region20: #{tpu_custom_call.1} parent=11 // pred_fallthru
          _
        // Predicated region
        $region21: #{tpu_custom_call.1} parent=11 // pred_check
          %p176 = pneg %p103
        $region22: #{tpu_custom_call.1} parent=11 // pred_check_branch
          %178 = sbr.rel (%p176) target = $region24
        $region23: #{tpu_custom_call.1} parent=11 // pred_region
          _
        $region24: #{tpu_custom_call.1} parent=11 // pred_fallthru
          _
      $region12: #{tpu_custom_call.1} parent=5 // pred_fallthru
        _
      %p179 = scmp.lt.s32.totalorder %s14, 4
      // Predicated region
      $region25: #{tpu_custom_call.1} parent=5 // pred_check
        %p180 = pneg %p179
      $region26: #{tpu_custom_call.1} parent=5 // pred_check_branch
        %182 = sbr.rel (%p180) target = $region28
      $region27: #{tpu_custom_call.1} parent=5 // pred_region
        // Predicated region
        $region29: #{tpu_custom_call.1} parent=27 // pred_check
          %p183 = pneg %p34
        $region30: #{tpu_custom_call.1} parent=27 // pred_check_branch
          %185 = sbr.rel (%p183) target = $region32
        $region31: #{tpu_custom_call.1} parent=27 // pred_region
          %s186 = smul.u32 32, %s14
          %s187 = ssub.s32 100, %s186
          %p188 = scmp.lt.s32.totalorder %s187, 32
          %s189 = scalar_select %p188, %s187, 32
          %s190 = smul.u32 4, %s189
          %p191 = scmp.lt.s32.totalorder %s186, 99
          %s192 = scalar_select %p191, %s186, 99
          %s193 = smul.addr %s192, 4
          %s194 = scalar_lea.vmem %s0, %s193
          %s195 = smul.u32 32, %s14
          %s196 = ssub.s32 100, %s195
          %p197 = scmp.lt.s32.totalorder %s196, 32
          %s198 = scalar_select %p197, %s196, 32
          %s199 = smul.u32 4, %s198
        $region32: #{tpu_custom_call.1} parent=27 // pred_fallthru
          _
        // Predicated region
        $region33: #{tpu_custom_call.1} parent=27 // pred_check
          %p200 = pneg %p123
        $region34: #{tpu_custom_call.1} parent=27 // pred_check_branch
          %202 = sbr.rel (%p200) target = $region36
        $region35: #{tpu_custom_call.1} parent=27 // pred_region
          %s203 = smul.u32 32, %s14
          %s204 = ssub.s32 100, %s203
          %p205 = scmp.lt.s32.totalorder %s204, 32
          %s206 = scalar_select %p205, %s204, 32
          %s207 = smul.u32 8, %s206
          %p208 = scmp.lt.s32.totalorder %s203, 99
          %s209 = scalar_select %p208, %s203, 99
          %s210 = smul.addr %s209, 8
          %s211 = scalar_lea.vmem %s4, %s210
          %s212 = smul.u32 32, %s14
          %s213 = ssub.s32 100, %s212
          %p214 = scmp.lt.s32.totalorder %s213, 32
          %s215 = scalar_select %p214, %s213, 32
          %s216 = smul.u32 8, %s215
        $region36: #{tpu_custom_call.1} parent=27 // pred_fallthru
          _
      $region28: #{tpu_custom_call.1} parent=5 // pred_fallthru
        _
      %p217 = scmp.le.s32.totalorder 1, %s14
      %p218 = scmp.lt.s32.totalorder %s14, 5
      %p219 = pnand %p217, %p218
      %p220 = pneg %p219
      // Predicated region
      $region37: #{tpu_custom_call.1} parent=5 // pred_check
        _
      $region38: #{tpu_custom_call.1} parent=5 // pred_check_branch
        %222 = sbr.rel (%p219) target = $region40
      $region39: #{tpu_custom_call.1} parent=5 // pred_region
        %s223 = ssub.s32 %s14, 1
        %s224 = smul.u32 32, %s19
        %s225 = ssub.s32 100, %s224
        %p226 = scmp.lt.s32.totalorder %s225, 32
        %s227 = scalar_select %p226, %s225, 32
        %s228 = smul.u32 4, %s227
        %p229 = scmp.lt.s32.totalorder %s224, 99
        %s230 = scalar_select %p229, %s224, 99
        %s231 = smul.addr %s230, 4
        %s232 = scalar_lea.vmem %s0, %s231
        %p233 = pneg %p40
        %p234 = pneg %p37
        %p235 = pneg %p61
        %p236 = pneg %p58
        %p237 = pneg %p82
        %p238 = pneg %p79
        %p239 = pneg %p103
        %p240 = pneg %p100
        %s241 = smul.u32 32, %s19
        %s242 = ssub.s32 100, %s241
        %p243 = scmp.lt.s32.totalorder %s242, 32
        %s244 = scalar_select %p243, %s242, 32
        %s245 = smul.u32 8, %s244
        %p246 = scmp.lt.s32.totalorder %s241, 99
        %s247 = scalar_select %p246, %s241, 99
        %s248 = smul.addr %s247, 8
        %s249 = scalar_lea.vmem %s4, %s248
        %p250 = pneg %p129
        %p251 = pneg %p126
        %p252 = pneg %p155
        %p253 = pneg %p152
        %s254 = sand.u32 %s142, 1
        %s255 = scalar_lea.sflag [#allocation3], %s254
        %s256 = sand.u32 %s142, 1
        %s257 = smul.addr %s256, 256
        %s258 = scalar_lea.vmem [#allocation2], %s257
        %s259 = smul.u32 32, %s19
        %s260 = ssub.s32 100, %s259
        %p261 = scmp.lt.s32.totalorder %s260, 32
        %s262 = scalar_select %p261, %s260, 32
        %s263 = smul.u32 4, %s262
        %p264 = scmp.lt.s32.totalorder %s259, 99
        %s265 = scalar_select %p264, %s259, 99
        %s266 = smul.addr %s265, 4
        %s267 = scalar_lea.vmem %s0, %s266
        %s268 = smul.u32 32, %s19
        %s269 = ssub.s32 100, %s268
        %p270 = scmp.lt.s32.totalorder %s269, 32
        %s271 = scalar_select %p270, %s269, 32
        %s272 = smul.u32 4, %s271
        %s273 = smul.u32 32, %s19
        %s274 = ssub.s32 100, %s273
        %p275 = scmp.lt.s32.totalorder %s274, 32
        %s276 = scalar_select %p275, %s274, 32
        %s277 = smul.u32 8, %s276
        %p278 = scmp.lt.s32.totalorder %s273, 99
        %s279 = scalar_select %p278, %s273, 99
        %s280 = smul.addr %s279, 8
        %s281 = scalar_lea.vmem %s4, %s280
        %s282 = smul.u32 32, %s19
        %s283 = ssub.s32 100, %s282
        %p284 = scmp.lt.s32.totalorder %s283, 32
        %s285 = scalar_select %p284, %s283, 32
        %s286 = smul.u32 8, %s285
        %s287 = smul.u32 32, %s19
        %s288 = ssub.s32 100, %s287
        %p289 = scmp.lt.s32.totalorder %s288, 32
        %s290 = scalar_select %p289, %s288, 32
        %s291 = smul.u32 4, %s290
        %s292 = smul.u32 %s291, 2
        %v293 = vld [vmem:[%s267] sm:$0xf]
        %v294 = vld [vmem:[%s267 + $0x4] sm:$0xf]
        %v295 = vld [vmem:[%s267 + $0x8] sm:$0xf]
        %v296 = vld [vmem:[%s267 + $0xc] sm:$0xf]
        %v297 = vld [vmem:[%s267 + $0x10] sm:$0xf]
        %v298 = vld [vmem:[%s267 + $0x14] sm:$0xf]
        %v299 = vld [vmem:[%s267 + $0x18] sm:$0xf]
        %v300 = vld [vmem:[%s267 + $0x1c] sm:$0xf]
        %v301 = vld [vmem:[%s267 + $0x20] sm:$0xf]
        %v302 = vld [vmem:[%s267 + $0x24] sm:$0xf]
        %v303 = vld [vmem:[%s267 + $0x28] sm:$0xf]
        %v304 = vld [vmem:[%s267 + $0x2c] sm:$0xf]
        %v305 = vld [vmem:[%s267 + $0x30] sm:$0xf]
        %v306 = vld [vmem:[%s267 + $0x34] sm:$0xf]
        %v307 = vld [vmem:[%s267 + $0x38] sm:$0xf]
        %v308 = vld [vmem:[%s267 + $0x3c] sm:$0xf]
        %v309 = vld [vmem:[%s267 + $0x40] sm:$0xf]
        %v310 = vld [vmem:[%s267 + $0x44] sm:$0xf]
        %v311 = vld [vmem:[%s267 + $0x48] sm:$0xf]
        %v312 = vld [vmem:[%s267 + $0x4c] sm:$0xf]
        %v313 = vld [vmem:[%s267 + $0x50] sm:$0xf]
        %v314 = vld [vmem:[%s267 + $0x54] sm:$0xf]
        %v315 = vld [vmem:[%s267 + $0x58] sm:$0xf]
        %v316 = vld [vmem:[%s267 + $0x5c] sm:$0xf]
        %v317 = vld [vmem:[%s267 + $0x60] sm:$0xf]
        %v318 = vld [vmem:[%s267 + $0x64] sm:$0xf]
        %v319 = vld [vmem:[%s267 + $0x68] sm:$0xf]
        %v320 = vld [vmem:[%s267 + $0x6c] sm:$0xf]
        %v321 = vld [vmem:[%s267 + $0x70] sm:$0xf]
        %v322 = vld [vmem:[%s267 + $0x74] sm:$0xf]
        %v323 = vld [vmem:[%s267 + $0x78] sm:$0xf]
        %v324 = vld [vmem:[%s267 + $0x7c] sm:$0xf]
        %v325 = vld [vmem:[%s1] sm:$0xff]
        %v326 = vld [vmem:[%s1 + $0x8] sm:$0xf]
        %v327 = vld [vmem:[%s1 + $0xc] sm:$0xff]
        %v328 = vld [vmem:[%s1 + $0x14] sm:$0xf]
        %v329 = vld [vmem:[%s1 + $0x18] sm:$0xff]
        %v330 = vld [vmem:[%s1 + $0x20] sm:$0xf]
        %v331 = vld [vmem:[%s1 + $0x24] sm:$0xff]
        %v332 = vld [vmem:[%s1 + $0x2c] sm:$0xf]
        %v333 = vld [vmem:[%s1 + $0x30] sm:$0xff]
        %v334 = vld [vmem:[%s1 + $0x38] sm:$0xf]
        %v335 = vld [vmem:[%s1 + $0x3c] sm:$0xff]
        %v336 = vld [vmem:[%s1 + $0x44] sm:$0xf]
        %v337 = vld [vmem:[%s1 + $0x48] sm:$0xff]
        %v338 = vld [vmem:[%s1 + $0x50] sm:$0xf]
        %v339 = vld [vmem:[%s1 + $0x54] sm:$0xff]
        %v340 = vld [vmem:[%s1 + $0x5c] sm:$0xf]
        %v341 = vld [vmem:[%s1 + $0x60] sm:$0xff]
        %v342 = vld [vmem:[%s1 + $0x68] sm:$0xf]
        %v343 = vld [vmem:[%s1 + $0x6c] sm:$0xff]
        %v344 = vld [vmem:[%s1 + $0x74] sm:$0xf]
        %v345 = vld [vmem:[%s1 + $0x78] sm:$0xff]
        %v346 = vld [vmem:[%s1 + $0x80] sm:$0xf]
        %v347 = vld [vmem:[%s1 + $0x84] sm:$0xff]
        %v348 = vld [vmem:[%s1 + $0x8c] sm:$0xf]
        %v349 = vld [vmem:[%s1 + $0x90] sm:$0xff]
        %v350 = vld [vmem:[%s1 + $0x98] sm:$0xf]
        %v351 = vld [vmem:[%s1 + $0x9c] sm:$0xff]
        %v352 = vld [vmem:[%s1 + $0xa4] sm:$0xf]
        %v353 = vld [vmem:[%s1 + $0xa8] sm:$0xff]
        %v354 = vld [vmem:[%s1 + $0xb0] sm:$0xf]
        %v355 = vld [vmem:[%s1 + $0xb4] sm:$0xff]
        %v356 = vld [vmem:[%s1 + $0xbc] sm:$0xf]
        %v389 = vunpack.c.l.b16 %v293
        %v390 = vunpack.c.l.b16 %v294
        %v391 = vunpack.c.l.b16 %v295
        %v392 = vunpack.c.l.b16 %v296
        %v393 = vunpack.c.l.b16 %v297
        %v394 = vunpack.c.l.b16 %v298
        %v395 = vunpack.c.l.b16 %v299
        %v396 = vunpack.c.l.b16 %v300
        %v397 = vunpack.c.l.b16 %v301
        %v398 = vunpack.c.l.b16 %v302
        %v399 = vunpack.c.l.b16 %v303
        %v400 = vunpack.c.l.b16 %v304
        %v401 = vunpack.c.l.b16 %v305
        %v402 = vunpack.c.l.b16 %v306
        %v403 = vunpack.c.l.b16 %v307
        %v404 = vunpack.c.l.b16 %v308
        %v405 = vunpack.c.l.b16 %v309
        %v406 = vunpack.c.l.b16 %v310
        %v407 = vunpack.c.l.b16 %v311
        %v408 = vunpack.c.l.b16 %v312
        %v409 = vunpack.c.l.b16 %v313
        %v410 = vunpack.c.l.b16 %v314
        %v411 = vunpack.c.l.b16 %v315
        %v412 = vunpack.c.l.b16 %v316
        %v413 = vunpack.c.l.b16 %v317
        %v414 = vunpack.c.l.b16 %v318
        %v415 = vunpack.c.l.b16 %v319
        %v416 = vunpack.c.l.b16 %v320
        %v417 = vunpack.c.l.b16 %v321
        %v418 = vunpack.c.l.b16 %v322
        %v419 = vunpack.c.l.b16 %v323
        %v420 = vunpack.c.l.b16 %v324
        %v421 = vpack.c.b16 %v390, %v389
        %v422 = vpack.c.b16 %v392, %v391
        %v423 = vpack.c.b16 %v394, %v393
        %v424 = vpack.c.b16 %v396, %v395
        %v425 = vpack.c.b16 %v398, %v397
        %v426 = vpack.c.b16 %v400, %v399
        %v427 = vpack.c.b16 %v402, %v401
        %v428 = vpack.c.b16 %v404, %v403
        %v429 = vpack.c.b16 %v406, %v405
        %v430 = vpack.c.b16 %v408, %v407
        %v431 = vpack.c.b16 %v410, %v409
        %v432 = vpack.c.b16 %v412, %v411
        %v433 = vpack.c.b16 %v414, %v413
        %v434 = vpack.c.b16 %v416, %v415
        %v435 = vpack.c.b16 %v418, %v417
        %v436 = vpack.c.b16 %v420, %v419
        %v485 = vunpack.c.l.b16 %v325
        %v486 = vunpack.c.h.b16 %v325
        %v487 = vunpack.c.l.b16 %v326
        %v488 = vunpack.c.l.b16 %v327
        %v489 = vunpack.c.h.b16 %v327
        %v490 = vunpack.c.l.b16 %v328
        %v491 = vunpack.c.l.b16 %v329
        %v492 = vunpack.c.h.b16 %v329
        %v493 = vunpack.c.l.b16 %v330
        %v494 = vunpack.c.l.b16 %v331
        %v495 = vunpack.c.h.b16 %v331
        %v496 = vunpack.c.l.b16 %v332
        %v497 = vunpack.c.l.b16 %v333
        %v498 = vunpack.c.h.b16 %v333
        %v499 = vunpack.c.l.b16 %v334
        %v500 = vunpack.c.l.b16 %v335
        %v501 = vunpack.c.h.b16 %v335
        %v502 = vunpack.c.l.b16 %v336
        %v503 = vunpack.c.l.b16 %v337
        %v504 = vunpack.c.h.b16 %v337
        %v505 = vunpack.c.l.b16 %v338
        %v506 = vunpack.c.l.b16 %v339
        %v507 = vunpack.c.h.b16 %v339
        %v508 = vunpack.c.l.b16 %v340
        %v509 = vunpack.c.l.b16 %v341
        %v510 = vunpack.c.h.b16 %v341
        %v511 = vunpack.c.l.b16 %v342
        %v512 = vunpack.c.l.b16 %v343
        %v513 = vunpack.c.h.b16 %v343
        %v514 = vunpack.c.l.b16 %v344
        %v515 = vunpack.c.l.b16 %v345
        %v516 = vunpack.c.h.b16 %v345
        %v517 = vunpack.c.l.b16 %v346
        %v518 = vunpack.c.l.b16 %v347
        %v519 = vunpack.c.h.b16 %v347
        %v520 = vunpack.c.l.b16 %v348
        %v521 = vunpack.c.l.b16 %v349
        %v522 = vunpack.c.h.b16 %v349
        %v523 = vunpack.c.l.b16 %v350
        %v524 = vunpack.c.l.b16 %v351
        %v525 = vunpack.c.h.b16 %v351
        %v526 = vunpack.c.l.b16 %v352
        %v527 = vunpack.c.l.b16 %v353
        %v528 = vunpack.c.h.b16 %v353
        %v529 = vunpack.c.l.b16 %v354
        %v530 = vunpack.c.l.b16 %v355
        %v531 = vunpack.c.h.b16 %v355
        %v532 = vunpack.c.l.b16 %v356
        %v533 = vpack.c.b16 %v488, %v485
        %v534 = vpack.c.b16 %v489, %v486
        %v535 = vpack.c.b16 %v490, %v487
        %v536 = vpack.c.b16 %v494, %v491
        %v537 = vpack.c.b16 %v495, %v492
        %v538 = vpack.c.b16 %v496, %v493
        %v539 = vpack.c.b16 %v500, %v497
        %v540 = vpack.c.b16 %v501, %v498
        %v541 = vpack.c.b16 %v502, %v499
        %v542 = vpack.c.b16 %v506, %v503
        %v543 = vpack.c.b16 %v507, %v504
        %v544 = vpack.c.b16 %v508, %v505
        %v545 = vpack.c.b16 %v512, %v509
        %v546 = vpack.c.b16 %v513, %v510
        %v547 = vpack.c.b16 %v514, %v511
        %v548 = vpack.c.b16 %v518, %v515
        %v549 = vpack.c.b16 %v519, %v516
        %v550 = vpack.c.b16 %v520, %v517
        %v551 = vpack.c.b16 %v524, %v521
        %v552 = vpack.c.b16 %v525, %v522
        %v553 = vpack.c.b16 %v526, %v523
        %v554 = vpack.c.b16 %v530, %v527
        %v555 = vpack.c.b16 %v531, %v528
        %v556 = vpack.c.b16 %v532, %v529
        %581 = vmatpush.bf16.msra.mxu0 %v554
        %582 = vmatpush.bf16.msra.mxu0 %v551
        %583 = vmatpush.bf16.msra.mxu0 %v548
        %584 = vmatpush.bf16.msra.mxu0 %v545
        %585 = vmatpush.bf16.msra.mxu0 %v542
        %586 = vmatpush.bf16.msra.mxu0 %v539
        %587 = vmatpush.bf16.msra.mxu0 %v536
        %588 = vmatpush.bf16.msra.mxu0 %v533
        %589 = vmatmul.bf16.gmra.mxu0 %v421
        %v590 = vpop.f32.mrf.mxu0
        %v591 = vadd.f32 0.0, %v590
        %v592 = vpop.f32.mrf.mxu0
        %v593 = vadd.f32 0.0, %v592
        %594 = vmatmul.bf16.gmra.mxu0 %v422
        %v595 = vpop.f32.mrf.mxu0
        %v596 = vadd.f32 0.0, %v595
        %v597 = vpop.f32.mrf.mxu0
        %v598 = vadd.f32 0.0, %v597
        %599 = vmatmul.bf16.gmra.mxu0 %v423
        %v600 = vpop.f32.mrf.mxu0
        %v601 = vadd.f32 0.0, %v600
        %v602 = vpop.f32.mrf.mxu0
        %v603 = vadd.f32 0.0, %v602
        %604 = vmatmul.bf16.gmra.mxu0 %v424
        %v605 = vpop.f32.mrf.mxu0
        %v606 = vadd.f32 0.0, %v605
        %v607 = vpop.f32.mrf.mxu0
        %v608 = vadd.f32 0.0, %v607
        %609 = vmatmul.bf16.gmra.mxu0 %v425
        %v610 = vpop.f32.mrf.mxu0
        %v611 = vadd.f32 0.0, %v610
        %v612 = vpop.f32.mrf.mxu0
        %v613 = vadd.f32 0.0, %v612
        %614 = vmatmul.bf16.gmra.mxu0 %v426
        %v615 = vpop.f32.mrf.mxu0
        %v616 = vadd.f32 0.0, %v615
        %v617 = vpop.f32.mrf.mxu0
        %v618 = vadd.f32 0.0, %v617
        %619 = vmatmul.bf16.gmra.mxu0 %v427
        %v620 = vpop.f32.mrf.mxu0
        %v621 = vadd.f32 0.0, %v620
        %v622 = vpop.f32.mrf.mxu0
        %v623 = vadd.f32 0.0, %v622
        %624 = vmatmul.bf16.gmra.mxu0 %v428
        %v625 = vpop.f32.mrf.mxu0
        %v626 = vadd.f32 0.0, %v625
        %v627 = vpop.f32.mrf.mxu0
        %v628 = vadd.f32 0.0, %v627
        %629 = vmatmul.bf16.gmra.mxu0 %v429
        %v630 = vpop.f32.mrf.mxu0
        %v631 = vadd.f32 0.0, %v630
        %v632 = vpop.f32.mrf.mxu0
        %v633 = vadd.f32 0.0, %v632
        %634 = vmatmul.bf16.gmra.mxu0 %v430
        %v635 = vpop.f32.mrf.mxu0
        %v636 = vadd.f32 0.0, %v635
        %v637 = vpop.f32.mrf.mxu0
        %v638 = vadd.f32 0.0, %v637
        %639 = vmatmul.bf16.gmra.mxu0 %v431
        %v640 = vpop.f32.mrf.mxu0
        %v641 = vadd.f32 0.0, %v640
        %v642 = vpop.f32.mrf.mxu0
        %v643 = vadd.f32 0.0, %v642
        %644 = vmatmul.bf16.gmra.mxu0 %v432
        %v645 = vpop.f32.mrf.mxu0
        %v646 = vadd.f32 0.0, %v645
        %v647 = vpop.f32.mrf.mxu0
        %v648 = vadd.f32 0.0, %v647
        %649 = vmatmul.bf16.gmra.mxu0 %v433
        %v650 = vpop.f32.mrf.mxu0
        %v651 = vadd.f32 0.0, %v650
        %v652 = vpop.f32.mrf.mxu0
        %v653 = vadd.f32 0.0, %v652
        %654 = vmatmul.bf16.gmra.mxu0 %v434
        %v655 = vpop.f32.mrf.mxu0
        %v656 = vadd.f32 0.0, %v655
        %v657 = vpop.f32.mrf.mxu0
        %v658 = vadd.f32 0.0, %v657
        %659 = vmatmul.bf16.gmra.mxu0 %v435
        %v660 = vpop.f32.mrf.mxu0
        %v661 = vadd.f32 0.0, %v660
        %v662 = vpop.f32.mrf.mxu0
        %v663 = vadd.f32 0.0, %v662
        %664 = vmatmul.bf16.gmra.mxu0 %v436
        %v665 = vpop.f32.mrf.mxu0
        %v666 = vadd.f32 0.0, %v665
        %v667 = vpop.f32.mrf.mxu0
        %v668 = vadd.f32 0.0, %v667
        %669 = vdwg.mxu0
        %670 = vmatpush.bf16.msra.mxu0 %v555
        %671 = vmatpush.bf16.msra.mxu0 %v552
        %672 = vmatpush.bf16.msra.mxu0 %v549
        %673 = vmatpush.bf16.msra.mxu0 %v546
        %674 = vmatpush.bf16.msra.mxu0 %v543
        %675 = vmatpush.bf16.msra.mxu0 %v540
        %676 = vmatpush.bf16.msra.mxu0 %v537
        %677 = vmatpush.bf16.msra.mxu0 %v534
        %678 = vmatmul.bf16.gmra.mxu0 %v421
        %v679 = vpop.f32.mrf.mxu0
        %v680 = vadd.f32 0.0, %v679
        %v681 = vpop.f32.mrf.mxu0
        %v682 = vadd.f32 0.0, %v681
        %683 = vmatmul.bf16.gmra.mxu0 %v422
        %v684 = vpop.f32.mrf.mxu0
        %v685 = vadd.f32 0.0, %v684
        %v686 = vpop.f32.mrf.mxu0
        %v687 = vadd.f32 0.0, %v686
        %688 = vmatmul.bf16.gmra.mxu0 %v423
        %v689 = vpop.f32.mrf.mxu0
        %v690 = vadd.f32 0.0, %v689
        %v691 = vpop.f32.mrf.mxu0
        %v692 = vadd.f32 0.0, %v691
        %693 = vmatmul.bf16.gmra.mxu0 %v424
        %v694 = vpop.f32.mrf.mxu0
        %v695 = vadd.f32 0.0, %v694
        %v696 = vpop.f32.mrf.mxu0
        %v697 = vadd.f32 0.0, %v696
        %698 = vmatmul.bf16.gmra.mxu0 %v425
        %v699 = vpop.f32.mrf.mxu0
        %v700 = vadd.f32 0.0, %v699
        %v701 = vpop.f32.mrf.mxu0
        %v702 = vadd.f32 0.0, %v701
        %703 = vmatmul.bf16.gmra.mxu0 %v426
        %v704 = vpop.f32.mrf.mxu0
        %v705 = vadd.f32 0.0, %v704
        %v706 = vpop.f32.mrf.mxu0
        %v707 = vadd.f32 0.0, %v706
        %708 = vmatmul.bf16.gmra.mxu0 %v427
        %v709 = vpop.f32.mrf.mxu0
        %v710 = vadd.f32 0.0, %v709
        %v711 = vpop.f32.mrf.mxu0
        %v712 = vadd.f32 0.0, %v711
        %713 = vmatmul.bf16.gmra.mxu0 %v428
        %v714 = vpop.f32.mrf.mxu0
        %v715 = vadd.f32 0.0, %v714
        %v716 = vpop.f32.mrf.mxu0
        %v717 = vadd.f32 0.0, %v716
        %718 = vmatmul.bf16.gmra.mxu0 %v429
        %v719 = vpop.f32.mrf.mxu0
        %v720 = vadd.f32 0.0, %v719
        %v721 = vpop.f32.mrf.mxu0
        %v722 = vadd.f32 0.0, %v721
        %723 = vmatmul.bf16.gmra.mxu0 %v430
        %v724 = vpop.f32.mrf.mxu0
        %v725 = vadd.f32 0.0, %v724
        %v726 = vpop.f32.mrf.mxu0
        %v727 = vadd.f32 0.0, %v726
        %728 = vmatmul.bf16.gmra.mxu0 %v431
        %v729 = vpop.f32.mrf.mxu0
        %v730 = vadd.f32 0.0, %v729
        %v731 = vpop.f32.mrf.mxu0
        %v732 = vadd.f32 0.0, %v731
        %733 = vmatmul.bf16.gmra.mxu0 %v432
        %v734 = vpop.f32.mrf.mxu0
        %v735 = vadd.f32 0.0, %v734
        %v736 = vpop.f32.mrf.mxu0
        %v737 = vadd.f32 0.0, %v736
        %738 = vmatmul.bf16.gmra.mxu0 %v433
        %v739 = vpop.f32.mrf.mxu0
        %v740 = vadd.f32 0.0, %v739
        %v741 = vpop.f32.mrf.mxu0
        %v742 = vadd.f32 0.0, %v741
        %743 = vmatmul.bf16.gmra.mxu0 %v434
        %v744 = vpop.f32.mrf.mxu0
        %v745 = vadd.f32 0.0, %v744
        %v746 = vpop.f32.mrf.mxu0
        %v747 = vadd.f32 0.0, %v746
        %748 = vmatmul.bf16.gmra.mxu0 %v435
        %v749 = vpop.f32.mrf.mxu0
        %v750 = vadd.f32 0.0, %v749
        %v751 = vpop.f32.mrf.mxu0
        %v752 = vadd.f32 0.0, %v751
        %753 = vmatmul.bf16.gmra.mxu0 %v436
        %v754 = vpop.f32.mrf.mxu0
        %v755 = vadd.f32 0.0, %v754
        %v756 = vpop.f32.mrf.mxu0
        %v757 = vadd.f32 0.0, %v756
        %758 = vdwg.mxu0
        %759 = vmatpush.bf16.msra.mxu0 %v556
        %760 = vmatpush.bf16.msra.mxu0 %v553
        %761 = vmatpush.bf16.msra.mxu0 %v550
        %762 = vmatpush.bf16.msra.mxu0 %v547
        %763 = vmatpush.bf16.msra.mxu0 %v544
        %764 = vmatpush.bf16.msra.mxu0 %v541
        %765 = vmatpush.bf16.msra.mxu0 %v538
        %766 = vmatpush.bf16.msra.mxu0 %v535
        %767 = vmatmul.bf16.gmra.mxu0 %v421
        %v768 = vpop.f32.mrf.mxu0
        %v769 = vadd.f32 0.0, %v768
        %v770 = vpop.f32.mrf.mxu0
        %v771 = vadd.f32 0.0, %v770
        %772 = vmatmul.bf16.gmra.mxu0 %v422
        %v773 = vpop.f32.mrf.mxu0
        %v774 = vadd.f32 0.0, %v773
        %v775 = vpop.f32.mrf.mxu0
        %v776 = vadd.f32 0.0, %v775
        %777 = vmatmul.bf16.gmra.mxu0 %v423
        %v778 = vpop.f32.mrf.mxu0
        %v779 = vadd.f32 0.0, %v778
        %v780 = vpop.f32.mrf.mxu0
        %v781 = vadd.f32 0.0, %v780
        %782 = vmatmul.bf16.gmra.mxu0 %v424
        %v783 = vpop.f32.mrf.mxu0
        %v784 = vadd.f32 0.0, %v783
        %v785 = vpop.f32.mrf.mxu0
        %v786 = vadd.f32 0.0, %v785
        %787 = vmatmul.bf16.gmra.mxu0 %v425
        %v788 = vpop.f32.mrf.mxu0
        %v789 = vadd.f32 0.0, %v788
        %v790 = vpop.f32.mrf.mxu0
        %v791 = vadd.f32 0.0, %v790
        %792 = vmatmul.bf16.gmra.mxu0 %v426
        %v793 = vpop.f32.mrf.mxu0
        %v794 = vadd.f32 0.0, %v793
        %v795 = vpop.f32.mrf.mxu0
        %v796 = vadd.f32 0.0, %v795
        %797 = vmatmul.bf16.gmra.mxu0 %v427
        %v798 = vpop.f32.mrf.mxu0
        %v799 = vadd.f32 0.0, %v798
        %v800 = vpop.f32.mrf.mxu0
        %v801 = vadd.f32 0.0, %v800
        %802 = vmatmul.bf16.gmra.mxu0 %v428
        %v803 = vpop.f32.mrf.mxu0
        %v804 = vadd.f32 0.0, %v803
        %v805 = vpop.f32.mrf.mxu0
        %v806 = vadd.f32 0.0, %v805
        %807 = vmatmul.bf16.gmra.mxu0 %v429
        %v808 = vpop.f32.mrf.mxu0
        %v809 = vadd.f32 0.0, %v808
        %v810 = vpop.f32.mrf.mxu0
        %v811 = vadd.f32 0.0, %v810
        %812 = vmatmul.bf16.gmra.mxu0 %v430
        %v813 = vpop.f32.mrf.mxu0
        %v814 = vadd.f32 0.0, %v813
        %v815 = vpop.f32.mrf.mxu0
        %v816 = vadd.f32 0.0, %v815
        %817 = vmatmul.bf16.gmra.mxu0 %v431
        %v818 = vpop.f32.mrf.mxu0
        %v819 = vadd.f32 0.0, %v818
        %v820 = vpop.f32.mrf.mxu0
        %v821 = vadd.f32 0.0, %v820
        %822 = vmatmul.bf16.gmra.mxu0 %v432
        %v823 = vpop.f32.mrf.mxu0
        %v824 = vadd.f32 0.0, %v823
        %v825 = vpop.f32.mrf.mxu0
        %v826 = vadd.f32 0.0, %v825
        %827 = vmatmul.bf16.gmra.mxu0 %v433
        %v828 = vpop.f32.mrf.mxu0
        %v829 = vadd.f32 0.0, %v828
        %v830 = vpop.f32.mrf.mxu0
        %v831 = vadd.f32 0.0, %v830
        %832 = vmatmul.bf16.gmra.mxu0 %v434
        %v833 = vpop.f32.mrf.mxu0
        %v834 = vadd.f32 0.0, %v833
        %v835 = vpop.f32.mrf.mxu0
        %v836 = vadd.f32 0.0, %v835
        %837 = vmatmul.bf16.gmra.mxu0 %v435
        %v838 = vpop.f32.mrf.mxu0
        %v839 = vadd.f32 0.0, %v838
        %v840 = vpop.f32.mrf.mxu0
        %v841 = vadd.f32 0.0, %v840
        %842 = vmatmul.bf16.gmra.mxu0 %v436
        %v843 = vpop.f32.mrf.mxu0
        %v844 = vadd.f32 0.0, %v843
        %v845 = vpop.f32.mrf.mxu0
        %v846 = vadd.f32 0.0, %v845
        %847 = vdwg.mxu0
        %v848 = vpack.c.bf16 %v771, %v769
        %v849 = vpack.c.bf16 %v776, %v774
        %v850 = vpack.c.bf16 %v781, %v779
        %v851 = vpack.c.bf16 %v786, %v784
        %v852 = vpack.c.bf16 %v791, %v789
        %v853 = vpack.c.bf16 %v796, %v794
        %v854 = vpack.c.bf16 %v801, %v799
        %v855 = vpack.c.bf16 %v806, %v804
        %v856 = vpack.c.bf16 %v811, %v809
        %v857 = vpack.c.bf16 %v816, %v814
        %v858 = vpack.c.bf16 %v821, %v819
        %v859 = vpack.c.bf16 %v826, %v824
        %v860 = vpack.c.bf16 %v831, %v829
        %v861 = vpack.c.bf16 %v836, %v834
        %v862 = vpack.c.bf16 %v841, %v839
        %v863 = vpack.c.bf16 %v846, %v844
        %v864 = vld [vmem:[%s3] sm:$0xff]
        %v865 = vld [vmem:[%s3 + $0x8] sm:$0xff]
        %v866 = vld [vmem:[%s3 + $0x10] sm:$0xff]
        %v867 = vld [vmem:[%s3 + $0x18] sm:$0xff]
        %v868 = vld [vmem:[%s3 + $0x20] sm:$0xff]
        %v869 = vld [vmem:[%s3 + $0x28] sm:$0xff]
        %v870 = vld [vmem:[%s3 + $0x30] sm:$0xff]
        %v871 = vld [vmem:[%s3 + $0x38] sm:$0xff]
        %v872 = vld [vmem:[%s3 + $0x40] sm:$0xff]
        %v873 = vld [vmem:[%s3 + $0x48] sm:$0xff]
        %v874 = vld [vmem:[%s3 + $0x50] sm:$0xff]
        %v875 = vld [vmem:[%s3 + $0x58] sm:$0xff]
        %v876 = vld [vmem:[%s3 + $0x60] sm:$0xff]
        %v877 = vld [vmem:[%s3 + $0x68] sm:$0xff]
        %v878 = vld [vmem:[%s3 + $0x70] sm:$0xff]
        %v879 = vld [vmem:[%s3 + $0x78] sm:$0xff]
        %v896 = vunpack.c.l.b16 %v864
        %v897 = vunpack.c.h.b16 %v864
        %v898 = vunpack.c.l.b16 %v865
        %v899 = vunpack.c.h.b16 %v865
        %v900 = vunpack.c.l.b16 %v866
        %v901 = vunpack.c.h.b16 %v866
        %v902 = vunpack.c.l.b16 %v867
        %v903 = vunpack.c.h.b16 %v867
        %v904 = vunpack.c.l.b16 %v868
        %v905 = vunpack.c.h.b16 %v868
        %v906 = vunpack.c.l.b16 %v869
        %v907 = vunpack.c.h.b16 %v869
        %v908 = vunpack.c.l.b16 %v870
        %v909 = vunpack.c.h.b16 %v870
        %v910 = vunpack.c.l.b16 %v871
        %v911 = vunpack.c.h.b16 %v871
        %v912 = vunpack.c.l.b16 %v872
        %v913 = vunpack.c.h.b16 %v872
        %v914 = vunpack.c.l.b16 %v873
        %v915 = vunpack.c.h.b16 %v873
        %v916 = vunpack.c.l.b16 %v874
        %v917 = vunpack.c.h.b16 %v874
        %v918 = vunpack.c.l.b16 %v875
        %v919 = vunpack.c.h.b16 %v875
        %v920 = vunpack.c.l.b16 %v876
        %v921 = vunpack.c.h.b16 %v876
        %v922 = vunpack.c.l.b16 %v877
        %v923 = vunpack.c.h.b16 %v877
        %v924 = vunpack.c.l.b16 %v878
        %v925 = vunpack.c.h.b16 %v878
        %v926 = vunpack.c.l.b16 %v879
        %v927 = vunpack.c.h.b16 %v879
        %v928 = vpack.c.b16 %v898, %v896
        %v929 = vpack.c.b16 %v899, %v897
        %v930 = vpack.c.b16 %v902, %v900
        %v931 = vpack.c.b16 %v903, %v901
        %v932 = vpack.c.b16 %v906, %v904
        %v933 = vpack.c.b16 %v907, %v905
        %v934 = vpack.c.b16 %v910, %v908
        %v935 = vpack.c.b16 %v911, %v909
        %v936 = vpack.c.b16 %v914, %v912
        %v937 = vpack.c.b16 %v915, %v913
        %v938 = vpack.c.b16 %v918, %v916
        %v939 = vpack.c.b16 %v919, %v917
        %v940 = vpack.c.b16 %v922, %v920
        %v941 = vpack.c.b16 %v923, %v921
        %v942 = vpack.c.b16 %v926, %v924
        %v943 = vpack.c.b16 %v927, %v925
        %960 = vmatpush.bf16.msra.mxu0 %v942
        %961 = vmatpush.bf16.msra.mxu0 %v940
        %962 = vmatpush.bf16.msra.mxu0 %v938
        %963 = vmatpush.bf16.msra.mxu0 %v936
        %964 = vmatpush.bf16.msra.mxu0 %v934
        %965 = vmatpush.bf16.msra.mxu0 %v932
        %966 = vmatpush.bf16.msra.mxu0 %v930
        %967 = vmatpush.bf16.msra.mxu0 %v928
        %968 = vmatmul.bf16.gmra.mxu0 %v848
        %v969 = vpop.f32.mrf.mxu0
        %v970 = vadd.f32 0.0, %v969
        %v971 = vpop.f32.mrf.mxu0
        %v972 = vadd.f32 0.0, %v971
        %973 = vmatmul.bf16.gmra.mxu0 %v849
        %v974 = vpop.f32.mrf.mxu0
        %v975 = vadd.f32 0.0, %v974
        %v976 = vpop.f32.mrf.mxu0
        %v977 = vadd.f32 0.0, %v976
        %978 = vmatmul.bf16.gmra.mxu0 %v850
        %v979 = vpop.f32.mrf.mxu0
        %v980 = vadd.f32 0.0, %v979
        %v981 = vpop.f32.mrf.mxu0
        %v982 = vadd.f32 0.0, %v981
        %983 = vmatmul.bf16.gmra.mxu0 %v851
        %v984 = vpop.f32.mrf.mxu0
        %v985 = vadd.f32 0.0, %v984
        %v986 = vpop.f32.mrf.mxu0
        %v987 = vadd.f32 0.0, %v986
        %988 = vmatmul.bf16.gmra.mxu0 %v852
        %v989 = vpop.f32.mrf.mxu0
        %v990 = vadd.f32 0.0, %v989
        %v991 = vpop.f32.mrf.mxu0
        %v992 = vadd.f32 0.0, %v991
        %993 = vmatmul.bf16.gmra.mxu0 %v853
        %v994 = vpop.f32.mrf.mxu0
        %v995 = vadd.f32 0.0, %v994
        %v996 = vpop.f32.mrf.mxu0
        %v997 = vadd.f32 0.0, %v996
        %998 = vmatmul.bf16.gmra.mxu0 %v854
        %v999 = vpop.f32.mrf.mxu0
        %v1000 = vadd.f32 0.0, %v999
        %v1001 = vpop.f32.mrf.mxu0
        %v1002 = vadd.f32 0.0, %v1001
        %1003 = vmatmul.bf16.gmra.mxu0 %v855
        %v1004 = vpop.f32.mrf.mxu0
        %v1005 = vadd.f32 0.0, %v1004
        %v1006 = vpop.f32.mrf.mxu0
        %v1007 = vadd.f32 0.0, %v1006
        %1008 = vmatmul.bf16.gmra.mxu0 %v856
        %v1009 = vpop.f32.mrf.mxu0
        %v1010 = vadd.f32 0.0, %v1009
        %v1011 = vpop.f32.mrf.mxu0
        %v1012 = vadd.f32 0.0, %v1011
        %1013 = vmatmul.bf16.gmra.mxu0 %v857
        %v1014 = vpop.f32.mrf.mxu0
        %v1015 = vadd.f32 0.0, %v1014
        %v1016 = vpop.f32.mrf.mxu0
        %v1017 = vadd.f32 0.0, %v1016
        %1018 = vmatmul.bf16.gmra.mxu0 %v858
        %v1019 = vpop.f32.mrf.mxu0
        %v1020 = vadd.f32 0.0, %v1019
        %v1021 = vpop.f32.mrf.mxu0
        %v1022 = vadd.f32 0.0, %v1021
        %1023 = vmatmul.bf16.gmra.mxu0 %v859
        %v1024 = vpop.f32.mrf.mxu0
        %v1025 = vadd.f32 0.0, %v1024
        %v1026 = vpop.f32.mrf.mxu0
        %v1027 = vadd.f32 0.0, %v1026
        %1028 = vmatmul.bf16.gmra.mxu0 %v860
        %v1029 = vpop.f32.mrf.mxu0
        %v1030 = vadd.f32 0.0, %v1029
        %v1031 = vpop.f32.mrf.mxu0
        %v1032 = vadd.f32 0.0, %v1031
        %1033 = vmatmul.bf16.gmra.mxu0 %v861
        %v1034 = vpop.f32.mrf.mxu0
        %v1035 = vadd.f32 0.0, %v1034
        %v1036 = vpop.f32.mrf.mxu0
        %v1037 = vadd.f32 0.0, %v1036
        %1038 = vmatmul.bf16.gmra.mxu0 %v862
        %v1039 = vpop.f32.mrf.mxu0
        %v1040 = vadd.f32 0.0, %v1039
        %v1041 = vpop.f32.mrf.mxu0
        %v1042 = vadd.f32 0.0, %v1041
        %1043 = vmatmul.bf16.gmra.mxu0 %v863
        %v1044 = vpop.f32.mrf.mxu0
        %v1045 = vadd.f32 0.0, %v1044
        %v1046 = vpop.f32.mrf.mxu0
        %v1047 = vadd.f32 0.0, %v1046
        %1048 = vdwg.mxu0
        %1049 = vmatpush.bf16.msra.mxu0 %v943
        %1050 = vmatpush.bf16.msra.mxu0 %v941
        %1051 = vmatpush.bf16.msra.mxu0 %v939
        %1052 = vmatpush.bf16.msra.mxu0 %v937
        %1053 = vmatpush.bf16.msra.mxu0 %v935
        %1054 = vmatpush.bf16.msra.mxu0 %v933
        %1055 = vmatpush.bf16.msra.mxu0 %v931
        %1056 = vmatpush.bf16.msra.mxu0 %v929
        %1057 = vmatmul.bf16.gmra.mxu0 %v848
        %v1058 = vpop.f32.mrf.mxu0
        %v1059 = vadd.f32 0.0, %v1058
        %v1060 = vpop.f32.mrf.mxu0
        %v1061 = vadd.f32 0.0, %v1060
        %1062 = vmatmul.bf16.gmra.mxu0 %v849
        %v1063 = vpop.f32.mrf.mxu0
        %v1064 = vadd.f32 0.0, %v1063
        %v1065 = vpop.f32.mrf.mxu0
        %v1066 = vadd.f32 0.0, %v1065
        %1067 = vmatmul.bf16.gmra.mxu0 %v850
        %v1068 = vpop.f32.mrf.mxu0
        %v1069 = vadd.f32 0.0, %v1068
        %v1070 = vpop.f32.mrf.mxu0
        %v1071 = vadd.f32 0.0, %v1070
        %1072 = vmatmul.bf16.gmra.mxu0 %v851
        %v1073 = vpop.f32.mrf.mxu0
        %v1074 = vadd.f32 0.0, %v1073
        %v1075 = vpop.f32.mrf.mxu0
        %v1076 = vadd.f32 0.0, %v1075
        %1077 = vmatmul.bf16.gmra.mxu0 %v852
        %v1078 = vpop.f32.mrf.mxu0
        %v1079 = vadd.f32 0.0, %v1078
        %v1080 = vpop.f32.mrf.mxu0
        %v1081 = vadd.f32 0.0, %v1080
        %1082 = vmatmul.bf16.gmra.mxu0 %v853
        %v1083 = vpop.f32.mrf.mxu0
        %v1084 = vadd.f32 0.0, %v1083
        %v1085 = vpop.f32.mrf.mxu0
        %v1086 = vadd.f32 0.0, %v1085
        %1087 = vmatmul.bf16.gmra.mxu0 %v854
        %v1088 = vpop.f32.mrf.mxu0
        %v1089 = vadd.f32 0.0, %v1088
        %v1090 = vpop.f32.mrf.mxu0
        %v1091 = vadd.f32 0.0, %v1090
        %1092 = vmatmul.bf16.gmra.mxu0 %v855
        %v1093 = vpop.f32.mrf.mxu0
        %v1094 = vadd.f32 0.0, %v1093
        %v1095 = vpop.f32.mrf.mxu0
        %v1096 = vadd.f32 0.0, %v1095
        %1097 = vmatmul.bf16.gmra.mxu0 %v856
        %v1098 = vpop.f32.mrf.mxu0
        %v1099 = vadd.f32 0.0, %v1098
        %v1100 = vpop.f32.mrf.mxu0
        %v1101 = vadd.f32 0.0, %v1100
        %1102 = vmatmul.bf16.gmra.mxu0 %v857
        %v1103 = vpop.f32.mrf.mxu0
        %v1104 = vadd.f32 0.0, %v1103
        %v1105 = vpop.f32.mrf.mxu0
        %v1106 = vadd.f32 0.0, %v1105
        %1107 = vmatmul.bf16.gmra.mxu0 %v858
        %v1108 = vpop.f32.mrf.mxu0
        %v1109 = vadd.f32 0.0, %v1108
        %v1110 = vpop.f32.mrf.mxu0
        %v1111 = vadd.f32 0.0, %v1110
        %1112 = vmatmul.bf16.gmra.mxu0 %v859
        %v1113 = vpop.f32.mrf.mxu0
        %v1114 = vadd.f32 0.0, %v1113
        %v1115 = vpop.f32.mrf.mxu0
        %v1116 = vadd.f32 0.0, %v1115
        %1117 = vmatmul.bf16.gmra.mxu0 %v860
        %v1118 = vpop.f32.mrf.mxu0
        %v1119 = vadd.f32 0.0, %v1118
        %v1120 = vpop.f32.mrf.mxu0
        %v1121 = vadd.f32 0.0, %v1120
        %1122 = vmatmul.bf16.gmra.mxu0 %v861
        %v1123 = vpop.f32.mrf.mxu0
        %v1124 = vadd.f32 0.0, %v1123
        %v1125 = vpop.f32.mrf.mxu0
        %v1126 = vadd.f32 0.0, %v1125
        %1127 = vmatmul.bf16.gmra.mxu0 %v862
        %v1128 = vpop.f32.mrf.mxu0
        %v1129 = vadd.f32 0.0, %v1128
        %v1130 = vpop.f32.mrf.mxu0
        %v1131 = vadd.f32 0.0, %v1130
        %1132 = vmatmul.bf16.gmra.mxu0 %v863
        %v1133 = vpop.f32.mrf.mxu0
        %v1134 = vadd.f32 0.0, %v1133
        %v1135 = vpop.f32.mrf.mxu0
        %v1136 = vadd.f32 0.0, %v1135
        %1137 = vdwg.mxu0
        %v1138 = vld [vmem:[%s2] sm:$0x3]
        %v1140 = vperm.slane %v1138, 0
        %v1141 = vperm.slane %v1138, 1
        %v1144 = vadd.f32 %v591, %v1140
        %v1145 = vadd.f32 %v680, %v1141
        %v1146 = vadd.f32 %v593, %v1140
        %v1147 = vadd.f32 %v682, %v1141
        %v1148 = vadd.f32 %v596, %v1140
        %v1149 = vadd.f32 %v685, %v1141
        %v1150 = vadd.f32 %v598, %v1140
        %v1151 = vadd.f32 %v687, %v1141
        %v1152 = vadd.f32 %v601, %v1140
        %v1153 = vadd.f32 %v690, %v1141
        %v1154 = vadd.f32 %v603, %v1140
        %v1155 = vadd.f32 %v692, %v1141
        %v1156 = vadd.f32 %v606, %v1140
        %v1157 = vadd.f32 %v695, %v1141
        %v1158 = vadd.f32 %v608, %v1140
        %v1159 = vadd.f32 %v697, %v1141
        %v1160 = vadd.f32 %v611, %v1140
        %v1161 = vadd.f32 %v700, %v1141
        %v1162 = vadd.f32 %v613, %v1140
        %v1163 = vadd.f32 %v702, %v1141
        %v1164 = vadd.f32 %v616, %v1140
        %v1165 = vadd.f32 %v705, %v1141
        %v1166 = vadd.f32 %v618, %v1140
        %v1167 = vadd.f32 %v707, %v1141
        %v1168 = vadd.f32 %v621, %v1140
        %v1169 = vadd.f32 %v710, %v1141
        %v1170 = vadd.f32 %v623, %v1140
        %v1171 = vadd.f32 %v712, %v1141
        %v1172 = vadd.f32 %v626, %v1140
        %v1173 = vadd.f32 %v715, %v1141
        %v1174 = vadd.f32 %v628, %v1140
        %v1175 = vadd.f32 %v717, %v1141
        %v1176 = vadd.f32 %v631, %v1140
        %v1177 = vadd.f32 %v720, %v1141
        %v1178 = vadd.f32 %v633, %v1140
        %v1179 = vadd.f32 %v722, %v1141
        %v1180 = vadd.f32 %v636, %v1140
        %v1181 = vadd.f32 %v725, %v1141
        %v1182 = vadd.f32 %v638, %v1140
        %v1183 = vadd.f32 %v727, %v1141
        %v1184 = vadd.f32 %v641, %v1140
        %v1185 = vadd.f32 %v730, %v1141
        %v1186 = vadd.f32 %v643, %v1140
        %v1187 = vadd.f32 %v732, %v1141
        %v1188 = vadd.f32 %v646, %v1140
        %v1189 = vadd.f32 %v735, %v1141
        %v1190 = vadd.f32 %v648, %v1140
        %v1191 = vadd.f32 %v737, %v1141
        %v1192 = vadd.f32 %v651, %v1140
        %v1193 = vadd.f32 %v740, %v1141
        %v1194 = vadd.f32 %v653, %v1140
        %v1195 = vadd.f32 %v742, %v1141
        %v1196 = vadd.f32 %v656, %v1140
        %v1197 = vadd.f32 %v745, %v1141
        %v1198 = vadd.f32 %v658, %v1140
        %v1199 = vadd.f32 %v747, %v1141
        %v1200 = vadd.f32 %v661, %v1140
        %v1201 = vadd.f32 %v750, %v1141
        %v1202 = vadd.f32 %v663, %v1140
        %v1203 = vadd.f32 %v752, %v1141
        %v1204 = vadd.f32 %v666, %v1140
        %v1205 = vadd.f32 %v755, %v1141
        %v1206 = vadd.f32 %v668, %v1140
        %v1207 = vadd.f32 %v757, %v1141
        %v1208 = vadd.f32 %v1144, %v970
        %v1209 = vadd.f32 %v1145, %v1059
        %v1210 = vadd.f32 %v1146, %v972
        %v1211 = vadd.f32 %v1147, %v1061
        %v1212 = vadd.f32 %v1148, %v975
        %v1213 = vadd.f32 %v1149, %v1064
        %v1214 = vadd.f32 %v1150, %v977
        %v1215 = vadd.f32 %v1151, %v1066
        %v1216 = vadd.f32 %v1152, %v980
        %v1217 = vadd.f32 %v1153, %v1069
        %v1218 = vadd.f32 %v1154, %v982
        %v1219 = vadd.f32 %v1155, %v1071
        %v1220 = vadd.f32 %v1156, %v985
        %v1221 = vadd.f32 %v1157, %v1074
        %v1222 = vadd.f32 %v1158, %v987
        %v1223 = vadd.f32 %v1159, %v1076
        %v1224 = vadd.f32 %v1160, %v990
        %v1225 = vadd.f32 %v1161, %v1079
        %v1226 = vadd.f32 %v1162, %v992
        %v1227 = vadd.f32 %v1163, %v1081
        %v1228 = vadd.f32 %v1164, %v995
        %v1229 = vadd.f32 %v1165, %v1084
        %v1230 = vadd.f32 %v1166, %v997
        %v1231 = vadd.f32 %v1167, %v1086
        %v1232 = vadd.f32 %v1168, %v1000
        %v1233 = vadd.f32 %v1169, %v1089
        %v1234 = vadd.f32 %v1170, %v1002
        %v1235 = vadd.f32 %v1171, %v1091
        %v1236 = vadd.f32 %v1172, %v1005
        %v1237 = vadd.f32 %v1173, %v1094
        %v1238 = vadd.f32 %v1174, %v1007
        %v1239 = vadd.f32 %v1175, %v1096
        %v1240 = vadd.f32 %v1176, %v1010
        %v1241 = vadd.f32 %v1177, %v1099
        %v1242 = vadd.f32 %v1178, %v1012
        %v1243 = vadd.f32 %v1179, %v1101
        %v1244 = vadd.f32 %v1180, %v1015
        %v1245 = vadd.f32 %v1181, %v1104
        %v1246 = vadd.f32 %v1182, %v1017
        %v1247 = vadd.f32 %v1183, %v1106
        %v1248 = vadd.f32 %v1184, %v1020
        %v1249 = vadd.f32 %v1185, %v1109
        %v1250 = vadd.f32 %v1186, %v1022
        %v1251 = vadd.f32 %v1187, %v1111
        %v1252 = vadd.f32 %v1188, %v1025
        %v1253 = vadd.f32 %v1189, %v1114
        %v1254 = vadd.f32 %v1190, %v1027
        %v1255 = vadd.f32 %v1191, %v1116
        %v1256 = vadd.f32 %v1192, %v1030
        %v1257 = vadd.f32 %v1193, %v1119
        %v1258 = vadd.f32 %v1194, %v1032
        %v1259 = vadd.f32 %v1195, %v1121
        %v1260 = vadd.f32 %v1196, %v1035
        %v1261 = vadd.f32 %v1197, %v1124
        %v1262 = vadd.f32 %v1198, %v1037
        %v1263 = vadd.f32 %v1199, %v1126
        %v1264 = vadd.f32 %v1200, %v1040
        %v1265 = vadd.f32 %v1201, %v1129
        %v1266 = vadd.f32 %v1202, %v1042
        %v1267 = vadd.f32 %v1203, %v1131
        %v1268 = vadd.f32 %v1204, %v1045
        %v1269 = vadd.f32 %v1205, %v1134
        %v1270 = vadd.f32 %v1206, %v1047
        %v1271 = vadd.f32 %v1207, %v1136
        %v1272 = vld [vmem:[%s281] sm:$0xff]
        %v1273 = vld [vmem:[%s281 + $0x8] sm:$0xff]
        %v1274 = vld [vmem:[%s281 + $0x10] sm:$0xff]
        %v1275 = vld [vmem:[%s281 + $0x18] sm:$0xff]
        %v1276 = vld [vmem:[%s281 + $0x20] sm:$0xff]
        %v1277 = vld [vmem:[%s281 + $0x28] sm:$0xff]
        %v1278 = vld [vmem:[%s281 + $0x30] sm:$0xff]
        %v1279 = vld [vmem:[%s281 + $0x38] sm:$0xff]
        %v1280 = vld [vmem:[%s281 + $0x40] sm:$0xff]
        %v1281 = vld [vmem:[%s281 + $0x48] sm:$0xff]
        %v1282 = vld [vmem:[%s281 + $0x50] sm:$0xff]
        %v1283 = vld [vmem:[%s281 + $0x58] sm:$0xff]
        %v1284 = vld [vmem:[%s281 + $0x60] sm:$0xff]
        %v1285 = vld [vmem:[%s281 + $0x68] sm:$0xff]
        %v1286 = vld [vmem:[%s281 + $0x70] sm:$0xff]
        %v1287 = vld [vmem:[%s281 + $0x78] sm:$0xff]
        %v1288 = vld [vmem:[%s281 + $0x80] sm:$0xff]
        %v1289 = vld [vmem:[%s281 + $0x88] sm:$0xff]
        %v1290 = vld [vmem:[%s281 + $0x90] sm:$0xff]
        %v1291 = vld [vmem:[%s281 + $0x98] sm:$0xff]
        %v1292 = vld [vmem:[%s281 + $0xa0] sm:$0xff]
        %v1293 = vld [vmem:[%s281 + $0xa8] sm:$0xff]
        %v1294 = vld [vmem:[%s281 + $0xb0] sm:$0xff]
        %v1295 = vld [vmem:[%s281 + $0xb8] sm:$0xff]
        %v1296 = vld [vmem:[%s281 + $0xc0] sm:$0xff]
        %v1297 = vld [vmem:[%s281 + $0xc8] sm:$0xff]
        %v1298 = vld [vmem:[%s281 + $0xd0] sm:$0xff]
        %v1299 = vld [vmem:[%s281 + $0xd8] sm:$0xff]
        %v1300 = vld [vmem:[%s281 + $0xe0] sm:$0xff]
        %v1301 = vld [vmem:[%s281 + $0xe8] sm:$0xff]
        %v1302 = vld [vmem:[%s281 + $0xf0] sm:$0xff]
        %v1303 = vld [vmem:[%s281 + $0xf8] sm:$0xff]
        %1305 = vset.pattern.permute.xlu0 0
        %1306 = vperm.xlu0 %1305, %v1272
        %v1307 = vpop.permute.xlu0 %1306
        %1310 = vset.pattern.permute.xlu0 0
        %1311 = vperm.xlu0 %1310, %v1273
        %v1312 = vpop.permute.xlu0 %1311
        %1315 = vset.pattern.permute.xlu0 0
        %1316 = vperm.xlu0 %1315, %v1274
        %v1317 = vpop.permute.xlu0 %1316
        %1320 = vset.pattern.permute.xlu0 0
        %1321 = vperm.xlu0 %1320, %v1275
        %v1322 = vpop.permute.xlu0 %1321
        %1325 = vset.pattern.permute.xlu0 0
        %1326 = vperm.xlu0 %1325, %v1276
        %v1327 = vpop.permute.xlu0 %1326
        %1330 = vset.pattern.permute.xlu0 0
        %1331 = vperm.xlu0 %1330, %v1277
        %v1332 = vpop.permute.xlu0 %1331
        %1335 = vset.pattern.permute.xlu0 0
        %1336 = vperm.xlu0 %1335, %v1278
        %v1337 = vpop.permute.xlu0 %1336
        %1340 = vset.pattern.permute.xlu0 0
        %1341 = vperm.xlu0 %1340, %v1279
        %v1342 = vpop.permute.xlu0 %1341
        %1345 = vset.pattern.permute.xlu0 0
        %1346 = vperm.xlu0 %1345, %v1280
        %v1347 = vpop.permute.xlu0 %1346
        %1350 = vset.pattern.permute.xlu0 0
        %1351 = vperm.xlu0 %1350, %v1281
        %v1352 = vpop.permute.xlu0 %1351
        %1355 = vset.pattern.permute.xlu0 0
        %1356 = vperm.xlu0 %1355, %v1282
        %v1357 = vpop.permute.xlu0 %1356
        %1360 = vset.pattern.permute.xlu0 0
        %1361 = vperm.xlu0 %1360, %v1283
        %v1362 = vpop.permute.xlu0 %1361
        %1365 = vset.pattern.permute.xlu0 0
        %1366 = vperm.xlu0 %1365, %v1284
        %v1367 = vpop.permute.xlu0 %1366
        %1370 = vset.pattern.permute.xlu0 0
        %1371 = vperm.xlu0 %1370, %v1285
        %v1372 = vpop.permute.xlu0 %1371
        %1375 = vset.pattern.permute.xlu0 0
        %1376 = vperm.xlu0 %1375, %v1286
        %v1377 = vpop.permute.xlu0 %1376
        %1380 = vset.pattern.permute.xlu0 0
        %1381 = vperm.xlu0 %1380, %v1287
        %v1382 = vpop.permute.xlu0 %1381
        %1385 = vset.pattern.permute.xlu0 0
        %1386 = vperm.xlu0 %1385, %v1288
        %v1387 = vpop.permute.xlu0 %1386
        %1390 = vset.pattern.permute.xlu0 0
        %1391 = vperm.xlu0 %1390, %v1289
        %v1392 = vpop.permute.xlu0 %1391
        %1395 = vset.pattern.permute.xlu0 0
        %1396 = vperm.xlu0 %1395, %v1290
        %v1397 = vpop.permute.xlu0 %1396
        %1400 = vset.pattern.permute.xlu0 0
        %1401 = vperm.xlu0 %1400, %v1291
        %v1402 = vpop.permute.xlu0 %1401
        %1405 = vset.pattern.permute.xlu0 0
        %1406 = vperm.xlu0 %1405, %v1292
        %v1407 = vpop.permute.xlu0 %1406
        %1410 = vset.pattern.permute.xlu0 0
        %1411 = vperm.xlu0 %1410, %v1293
        %v1412 = vpop.permute.xlu0 %1411
        %1415 = vset.pattern.permute.xlu0 0
        %1416 = vperm.xlu0 %1415, %v1294
        %v1417 = vpop.permute.xlu0 %1416
        %1420 = vset.pattern.permute.xlu0 0
        %1421 = vperm.xlu0 %1420, %v1295
        %v1422 = vpop.permute.xlu0 %1421
        %1425 = vset.pattern.permute.xlu0 0
        %1426 = vperm.xlu0 %1425, %v1296
        %v1427 = vpop.permute.xlu0 %1426
        %1430 = vset.pattern.permute.xlu0 0
        %1431 = vperm.xlu0 %1430, %v1297
        %v1432 = vpop.permute.xlu0 %1431
        %1435 = vset.pattern.permute.xlu0 0
        %1436 = vperm.xlu0 %1435, %v1298
        %v1437 = vpop.permute.xlu0 %1436
        %1440 = vset.pattern.permute.xlu0 0
        %1441 = vperm.xlu0 %1440, %v1299
        %v1442 = vpop.permute.xlu0 %1441
        %1445 = vset.pattern.permute.xlu0 0
        %1446 = vperm.xlu0 %1445, %v1300
        %v1447 = vpop.permute.xlu0 %1446
        %1450 = vset.pattern.permute.xlu0 0
        %1451 = vperm.xlu0 %1450, %v1301
        %v1452 = vpop.permute.xlu0 %1451
        %1455 = vset.pattern.permute.xlu0 0
        %1456 = vperm.xlu0 %1455, %v1302
        %v1457 = vpop.permute.xlu0 %1456
        %1460 = vset.pattern.permute.xlu0 0
        %1461 = vperm.xlu0 %1460, %v1303
        %v1462 = vpop.permute.xlu0 %1461
        %v1464 = vmul.f32 %v1307, %v1208
        %v1465 = vmul.f32 %v1307, %v1209
        %v1466 = vmul.f32 %v1312, %v1210
        %v1467 = vmul.f32 %v1312, %v1211
        %v1468 = vmul.f32 %v1317, %v1212
        %v1469 = vmul.f32 %v1317, %v1213
        %v1470 = vmul.f32 %v1322, %v1214
        %v1471 = vmul.f32 %v1322, %v1215
        %v1472 = vmul.f32 %v1327, %v1216
        %v1473 = vmul.f32 %v1327, %v1217
        %v1474 = vmul.f32 %v1332, %v1218
        %v1475 = vmul.f32 %v1332, %v1219
        %v1476 = vmul.f32 %v1337, %v1220
        %v1477 = vmul.f32 %v1337, %v1221
        %v1478 = vmul.f32 %v1342, %v1222
        %v1479 = vmul.f32 %v1342, %v1223
        %v1480 = vmul.f32 %v1347, %v1224
        %v1481 = vmul.f32 %v1347, %v1225
        %v1482 = vmul.f32 %v1352, %v1226
        %v1483 = vmul.f32 %v1352, %v1227
        %v1484 = vmul.f32 %v1357, %v1228
        %v1485 = vmul.f32 %v1357, %v1229
        %v1486 = vmul.f32 %v1362, %v1230
        %v1487 = vmul.f32 %v1362, %v1231
        %v1488 = vmul.f32 %v1367, %v1232
        %v1489 = vmul.f32 %v1367, %v1233
        %v1490 = vmul.f32 %v1372, %v1234
        %v1491 = vmul.f32 %v1372, %v1235
        %v1492 = vmul.f32 %v1377, %v1236
        %v1493 = vmul.f32 %v1377, %v1237
        %v1494 = vmul.f32 %v1382, %v1238
        %v1495 = vmul.f32 %v1382, %v1239
        %v1496 = vmul.f32 %v1387, %v1240
        %v1497 = vmul.f32 %v1387, %v1241
        %v1498 = vmul.f32 %v1392, %v1242
        %v1499 = vmul.f32 %v1392, %v1243
        %v1500 = vmul.f32 %v1397, %v1244
        %v1501 = vmul.f32 %v1397, %v1245
        %v1502 = vmul.f32 %v1402, %v1246
        %v1503 = vmul.f32 %v1402, %v1247
        %v1504 = vmul.f32 %v1407, %v1248
        %v1505 = vmul.f32 %v1407, %v1249
        %v1506 = vmul.f32 %v1412, %v1250
        %v1507 = vmul.f32 %v1412, %v1251
        %v1508 = vmul.f32 %v1417, %v1252
        %v1509 = vmul.f32 %v1417, %v1253
        %v1510 = vmul.f32 %v1422, %v1254
        %v1511 = vmul.f32 %v1422, %v1255
        %v1512 = vmul.f32 %v1427, %v1256
        %v1513 = vmul.f32 %v1427, %v1257
        %v1514 = vmul.f32 %v1432, %v1258
        %v1515 = vmul.f32 %v1432, %v1259
        %v1516 = vmul.f32 %v1437, %v1260
        %v1517 = vmul.f32 %v1437, %v1261
        %v1518 = vmul.f32 %v1442, %v1262
        %v1519 = vmul.f32 %v1442, %v1263
        %v1520 = vmul.f32 %v1447, %v1264
        %v1521 = vmul.f32 %v1447, %v1265
        %v1522 = vmul.f32 %v1452, %v1266
        %v1523 = vmul.f32 %v1452, %v1267
        %v1524 = vmul.f32 %v1457, %v1268
        %v1525 = vmul.f32 %v1457, %v1269
        %v1526 = vmul.f32 %v1462, %v1270
        %v1527 = vmul.f32 %v1462, %v1271
        %v1528 = vpack.c.bf16 %v1465, %v1464
        %v1529 = vpack.c.bf16 %v1467, %v1466
        %v1530 = vpack.c.bf16 %v1469, %v1468
        %v1531 = vpack.c.bf16 %v1471, %v1470
        %v1532 = vpack.c.bf16 %v1473, %v1472
        %v1533 = vpack.c.bf16 %v1475, %v1474
        %v1534 = vpack.c.bf16 %v1477, %v1476
        %v1535 = vpack.c.bf16 %v1479, %v1478
        %v1536 = vpack.c.bf16 %v1481, %v1480
        %v1537 = vpack.c.bf16 %v1483, %v1482
        %v1538 = vpack.c.bf16 %v1485, %v1484
        %v1539 = vpack.c.bf16 %v1487, %v1486
        %v1540 = vpack.c.bf16 %v1489, %v1488
        %v1541 = vpack.c.bf16 %v1491, %v1490
        %v1542 = vpack.c.bf16 %v1493, %v1492
        %v1543 = vpack.c.bf16 %v1495, %v1494
        %v1544 = vpack.c.bf16 %v1497, %v1496
        %v1545 = vpack.c.bf16 %v1499, %v1498
        %v1546 = vpack.c.bf16 %v1501, %v1500
        %v1547 = vpack.c.bf16 %v1503, %v1502
        %v1548 = vpack.c.bf16 %v1505, %v1504
        %v1549 = vpack.c.bf16 %v1507, %v1506
        %v1550 = vpack.c.bf16 %v1509, %v1508
        %v1551 = vpack.c.bf16 %v1511, %v1510
        %v1552 = vpack.c.bf16 %v1513, %v1512
        %v1553 = vpack.c.bf16 %v1515, %v1514
        %v1554 = vpack.c.bf16 %v1517, %v1516
        %v1555 = vpack.c.bf16 %v1519, %v1518
        %v1556 = vpack.c.bf16 %v1521, %v1520
        %v1557 = vpack.c.bf16 %v1523, %v1522
        %v1558 = vpack.c.bf16 %v1525, %v1524
        %v1559 = vpack.c.bf16 %v1527, %v1526
        %1560 = vst [vmem:[%s258] sm:$0xff] %v1528
        %1561 = vst [vmem:[%s258 + $0x8] sm:$0xff] %v1529
        %1562 = vst [vmem:[%s258 + $0x10] sm:$0xff] %v1530
        %1563 = vst [vmem:[%s258 + $0x18] sm:$0xff] %v1531
        %1564 = vst [vmem:[%s258 + $0x20] sm:$0xff] %v1532
        %1565 = vst [vmem:[%s258 + $0x28] sm:$0xff] %v1533
        %1566 = vst [vmem:[%s258 + $0x30] sm:$0xff] %v1534
        %1567 = vst [vmem:[%s258 + $0x38] sm:$0xff] %v1535
        %1568 = vst [vmem:[%s258 + $0x40] sm:$0xff] %v1536
        %1569 = vst [vmem:[%s258 + $0x48] sm:$0xff] %v1537
        %1570 = vst [vmem:[%s258 + $0x50] sm:$0xff] %v1538
        %1571 = vst [vmem:[%s258 + $0x58] sm:$0xff] %v1539
        %1572 = vst [vmem:[%s258 + $0x60] sm:$0xff] %v1540
        %1573 = vst [vmem:[%s258 + $0x68] sm:$0xff] %v1541
        %1574 = vst [vmem:[%s258 + $0x70] sm:$0xff] %v1542
        %1575 = vst [vmem:[%s258 + $0x78] sm:$0xff] %v1543
        %1576 = vst [vmem:[%s258 + $0x80] sm:$0xff] %v1544
        %1577 = vst [vmem:[%s258 + $0x88] sm:$0xff] %v1545
        %1578 = vst [vmem:[%s258 + $0x90] sm:$0xff] %v1546
        %1579 = vst [vmem:[%s258 + $0x98] sm:$0xff] %v1547
        %1580 = vst [vmem:[%s258 + $0xa0] sm:$0xff] %v1548
        %1581 = vst [vmem:[%s258 + $0xa8] sm:$0xff] %v1549
        %1582 = vst [vmem:[%s258 + $0xb0] sm:$0xff] %v1550
        %1583 = vst [vmem:[%s258 + $0xb8] sm:$0xff] %v1551
        %1584 = vst [vmem:[%s258 + $0xc0] sm:$0xff] %v1552
        %1585 = vst [vmem:[%s258 + $0xc8] sm:$0xff] %v1553
        %1586 = vst [vmem:[%s258 + $0xd0] sm:$0xff] %v1554
        %1587 = vst [vmem:[%s258 + $0xd8] sm:$0xff] %v1555
        %1588 = vst [vmem:[%s258 + $0xe0] sm:$0xff] %v1556
        %1589 = vst [vmem:[%s258 + $0xe8] sm:$0xff] %v1557
        %1590 = vst [vmem:[%s258 + $0xf0] sm:$0xff] %v1558
        %1591 = vst [vmem:[%s258 + $0xf8] sm:$0xff] %v1559
        %s1592 = sand.u32 %s142, 1
        %s1593 = scalar_lea.sflag [#allocation3], %s1592
        %s1594 = sand.u32 %s142, 1
        %s1595 = smul.addr %s1594, 256
        %s1596 = scalar_lea.vmem [#allocation2], %s1595
        // Predicated region
        $region41: #{tpu_custom_call.1} parent=39 // pred_check
          %p1597 = pneg %p152
        $region42: #{tpu_custom_call.1} parent=39 // pred_check_branch
          %1599 = sbr.rel (%p1597) target = $region44
        $region43: #{tpu_custom_call.1} parent=39 // pred_region
          %s1600 = smul.u32 32, %s19
          %s1601 = ssub.s32 100, %s1600
          %p1602 = scmp.lt.s32.totalorder %s1601, 32
          %s1603 = scalar_select %p1602, %s1601, 32
          %s1604 = smul.u32 4, %s1603
          %s1605 = smul.u32 %s1604, 2
          %s1606 = ssub.s32 256, %s1605
          %s1607 = sshll.u32 %s1606, 4
          %1608 = vsyncadd %s1593, %s1607
          %p1609 = scmp.ne.s32.totalorder 0, %s1605
          %s1610 = smul.addr %s1600, 2
          %s1611 = smul.addr %s1610, 4
          %s1612 = scalar_lea.hbm %s5, %s1611
          %s1613 = smul.u32 8, %s1603
          %s1614 = sshll.u32 %s1596, 4
          %s1615 = int_to_ptr.vmem [resolvable:$true] %s1614
          %s1616 = sshll.u32 %s1612, 4
          %s1617 = int_to_ptr.hbm [resolvable:$true] %s1616
          %s1618 = sshll.u32 %s1613, 4
          %1622 = dma.vmem_to_hbm [thread:$0]  (%p1609), %s1615, %s1618, %s1617, %s1593, 128, 128, 8
        $region44: #{tpu_custom_call.1} parent=39 // pred_fallthru
          _
      $region40: #{tpu_custom_call.1} parent=5 // pred_fallthru
        _
      %p1623 = scmp.le.s32.totalorder 2, %s14
      // Predicated region
      $region45: #{tpu_custom_call.1} parent=5 // pred_check
        %p1624 = pneg %p1623
      $region46: #{tpu_custom_call.1} parent=5 // pred_check_branch
        %1626 = sbr.rel (%p1624) target = $region48
      $region47: #{tpu_custom_call.1} parent=5 // pred_region
        %s1627 = ssub.s32 %s14, 2
        // Predicated region
        $region49: #{tpu_custom_call.1} parent=47 // pred_check
          %p1628 = pneg %p158
        $region50: #{tpu_custom_call.1} parent=47 // pred_check_branch
          %1630 = sbr.rel (%p1628) target = $region52
        $region51: #{tpu_custom_call.1} parent=47 // pred_region
          %s1631 = sand.u32 %s143, 1
          %s1632 = scalar_lea.sflag [#allocation3], %s1631
          %s1633 = sand.u32 %s143, 1
          %s1634 = smul.addr %s1633, 256
          %s1635 = scalar_lea.vmem [#allocation2], %s1634
          %1637 = dma.done %s1632, 4096
        $region52: #{tpu_custom_call.1} parent=47 // pred_fallthru
          _
      $region48: #{tpu_custom_call.1} parent=5 // pred_fallthru
        _
    $region6: #{tpu_custom_call.1} parent=1 // loop_footer
      %s18 = sadd.s32 1, %s14
    $region7: #{tpu_custom_call.1} parent=1 // loop_footer_branch
      %13 = sbr.rel target = $region3
    $region8: #{tpu_custom_call.1} parent=1 // loop_exit
      _
    %1638 = vsyncpa [#allocation3], 1
    %s1639 = scalar_lea.sflag [#allocation3], 1
    %1640 = vsyncpa %s1639, 1

</llo_original>
